<compile_context>
chip_gen: v6e
topology: v6e:2x2x1
jax: 0.10.0
libtpu: 0.0.40
codegen_flags: <defaults>
</compile_context>

<pallas_src>
import functools

import jax
import jax.numpy as jnp
from jax import lax
from jax.experimental import pallas as pl
from jax.experimental.pallas import tpu as pltpu


def _layernorm(x, gamma, beta, eps):
    mu = jnp.mean(x, axis=-1, keepdims=True)
    xc = x - mu
    var = jnp.mean(xc * xc, axis=-1, keepdims=True)
    return xc * lax.rsqrt(var + eps) * gamma + beta


def _gelu_tanh(x):
    # TODO(synk): PyTorch nn.GELU() is the exact erf form; the tanh
    # approximation (max abs deviation ~3e-3) is used because it lowers to a
    # plain EUP tanh on every TPU generation.
    c = 0.7978845608028654  # sqrt(2/pi)
    return 0.5 * x * (1.0 + jnp.tanh(c * (x + 0.044715 * x * x * x)))


def encoder_block_kernel(x_ref,
                         ln1_g_ref, ln1_b_ref,
                         wqkv_ref, bqkv_ref,
                         wp_ref, bp_ref,
                         ln2_g_ref, ln2_b_ref,
                         w1_ref, b1_ref,
                         w2_ref, b2_ref,
                         o_ref,
                         *, bt, seq_len, valid_len, num_heads, head_dim,
                         emb_size, ffn_dim, ffn_chunk, eps):
    N, H, D, E, F = seq_len, num_heads, head_dim, emb_size, ffn_dim
    M = bt * N

    # (bt, N, E) -> (bt*N, E): leading-dim collapse, no data movement.
    x = x_ref[...].astype(jnp.float32).reshape(M, E)

    # ---------------- attention half-block ----------------
    h1 = _layernorm(x, ln1_g_ref[...], ln1_b_ref[...], eps)

    # Fused QKV projection: one (M, E) x (E, 3E) matmul, bf16 operands,
    # f32 accumulation.  Columns are ordered [ q(h,d) | k(h,d) | v(h,d) ].
    qkv = lax.dot_general(h1.astype(jnp.bfloat16), wqkv_ref[...],
                          (((1,), (0,)), ((), ())),
                          preferred_element_type=jnp.float32)
    # Single f32->bf16 cast right after the bias add (halves live footprint).
    qkv = (qkv + bqkv_ref[...]).astype(jnp.bfloat16)

    # Additive key mask for padded sequence positions (static branch).
    if valid_len < N:
        key_ids = lax.broadcasted_iota(jnp.int32, (N, N), 1)
        key_bias = jnp.where(key_ids < valid_len, 0.0, -1e30).astype(jnp.float32)
    else:
        key_bias = None

    scaling = float(emb_size) ** 0.5
    ctx_parts = []
    for hh in range(H):                     # static loop over heads only
        c0 = hh * D
        qh = qkv[:, c0:c0 + D].reshape(bt, N, D)
        kh = qkv[:, E + c0:E + c0 + D].reshape(bt, N, D)
        vh = qkv[:, 2 * E + c0:2 * E + c0 + D].reshape(bt, N, D)

        # q @ k^T batched over the batch-tile ('bqd,bkd->bqk'), no transpose.
        s = lax.dot_general(qh, kh, (((2,), (2,)), ((0,), (0,))),
                            preferred_element_type=jnp.float32)   # (bt, N, N)
        if key_bias is not None:
            s = s + key_bias

        # softmax over keys, THEN divide by sqrt(emb_size) (faithful to the
        # reference); the extra scale is folded into the softmax normalizer
        # and handled by an approximate EUP reciprocal.
        m = jnp.max(s, axis=-1, keepdims=True)
        e = jnp.exp(s - m)
        denom = jnp.sum(e, axis=-1, keepdims=True)
        att = (e * pl.reciprocal(denom * scaling, approx=True)).astype(jnp.bfloat16)
        # att_drop has p=0 in the module -> identity.

        # att @ v batched over the batch-tile ('bqk,bkd->bqd').
        ctx_parts.append(
            lax.dot_general(att, vh, (((2,), (1,)), ((0,), (0,))),
                            preferred_element_type=jnp.float32
                            ).astype(jnp.bfloat16))               # (bt, N, D)

    # One lane-dense (M, E) bf16 context value; no masked partial stores.
    ctx = jnp.concatenate(ctx_parts, axis=-1).reshape(M, E)

    attn = lax.dot_general(ctx, wp_ref[...], (((1,), (0,)), ((), ())),
                           preferred_element_type=jnp.float32) + bp_ref[...]
    x = x + attn                              # residual add 1 (f32)

    # ---------------- feed-forward half-block (Fdim-tiled) ----------------
    h2 = _layernorm(x, ln2_g_ref[...], ln2_b_ref[...], eps).astype(jnp.bfloat16)
    acc = x + b2_ref[...]                     # residual + down-proj bias
    for c0 in range(0, F, ffn_chunk):         # static chunk loop over Fdim
        fc = lax.dot_general(h2, w1_ref[:, c0:c0 + ffn_chunk],
                             (((1,), (0,)), ((), ())),
                             preferred_element_type=jnp.float32)
        fc = _gelu_tanh(fc + b1_ref[:, c0:c0 + ffn_chunk])
        acc = acc + lax.dot_general(fc.astype(jnp.bfloat16),
                                    w2_ref[c0:c0 + ffn_chunk, :],
                                    (((1,), (0,)), ((), ())),
                                    preferred_element_type=jnp.float32)

    o_ref[...] = acc.reshape(bt, N, E).astype(o_ref.dtype)


def _chip_defaults():
    """(target matmul M rows, per-chip VMEM budget in bytes).

    Best-effort hardware introspection; conservative fallbacks (256 rows,
    48 MiB — safe under v7x's 64 MiB/TC) if the query is unavailable."""
    target_m = 256                      # v6e/v7x MXUs are 2x256^2
    vmem_budget = 48 * 1024 * 1024
    try:
        info = pltpu.get_tpu_info()
        cap = int(getattr(info, "vmem_capacity_bytes"))
        # Leave ~25% headroom for compiler scratch; cap at ~100 MiB.
        vmem_budget = min((cap * 3) // 4, 100 * 1024 * 1024)
        name = (str(getattr(info, "chip_version", "")) +
                str(getattr(info, "name", ""))).lower()
        if "v5" in name or "5e" in name or "5p" in name:
            target_m = 128              # v5e MXU is 128-wide: 128 rows saturate it
    except Exception:                   # introspection is a best-effort hint only
        pass
    return target_m, vmem_budget


def _choose_block_batch(B, N, target_m):
    """Pick bt | B.  Prefer bt*N >= target_m with >= 2 grid steps (fills the
    MXU M dim AND keeps both v7x TensorCores busy); else keep >= 2 steps and
    maximize bt*N; else the whole batch."""
    for bt in range(1, B + 1):
        if B % bt == 0 and bt * N >= target_m and B // bt >= 2:
            return bt
    for bt in range(B, 0, -1):
        if B % bt == 0 and B // bt >= 2:
            return bt
    return B


def _ffn_chunk(F):
    for c in (512, 256, 128):
        if F >= c and F % c == 0:
            return c
    return F


def _vmem_limit_bytes(bt, n, e, f, vmem_budget, single_buffer_weights):
    wbuf = 1 if single_buffer_weights else 2
    weight_bytes = 2 * (e * 3 * e + e * e + 2 * e * f) * wbuf   # bf16 matrices
    small_bytes = 4 * (3 * e + 6 * e + f)                        # biases + LN params
    io_bytes = 2 * 2 * (bt * n * e * 4)                          # x in+out, double-buffered f32
    headroom = 24 * 1024 * 1024                                  # spill / compiler scratch
    need = weight_bytes + small_bytes + io_bytes + headroom
    return int(min(vmem_budget, max(32 * 1024 * 1024, need)))


def transformer_block(x, p, *, num_heads, block_batch=None):
    """One TransformerEncoderBlock as a single fused pallas_call."""
    B, N, E = x.shape
    D = E // num_heads
    Fdim = p["w1"].shape[1]

    # Sublane-align the sequence length (e.g. ViT's N=197 -> 200); padded key
    # positions are masked out of the softmax inside the kernel.
    # TODO(synk): also pad E / Fdim to multiples of 128 for lane-dense stores
    # when they are not already (ViT's 768 / 3072 are); that needs masked
    # LayerNorm statistics, so it is not done here.
    N_pad = ((N + 7) // 8) * 8
    x_in = jnp.pad(x, ((0, 0), (0, N_pad - N), (0, 0))) if N_pad != N else x

    target_m, vmem_budget = _chip_defaults()
    bt = block_batch if block_batch is not None else _choose_block_batch(B, N_pad, target_m)
    assert B % bt == 0
    grid = (B // bt,)

    kernel = functools.partial(
        encoder_block_kernel, bt=bt, seq_len=N_pad, valid_len=N,
        num_heads=num_heads, head_dim=D, emb_size=E,
        ffn_dim=Fdim, ffn_chunk=_ffn_chunk(Fdim), eps=1e-5)

    # Rough cost hint so XLA schedules the surrounding ops sensibly.
    flops = 2 * B * N_pad * E * (3 * E + E + 2 * Fdim) + 4 * B * N_pad * N_pad * E
    transcendentals = B * num_heads * N_pad * N_pad + 2 * B * N_pad * Fdim
    bytes_accessed = (2 * B * N_pad * E * 4                   # x in + out (f32)
                      + (4 * E * E + 2 * E * Fdim) * 2        # bf16 weights
                      + (8 * E + 2 * Fdim) * 4)               # biases + LN params
    cost = pl.CostEstimate(flops=flops, transcendentals=transcendentals,
                           bytes_accessed=bytes_accessed)

    x_spec = pl.BlockSpec((bt, N_pad, E), lambda b: (b, 0, 0))
    out_spec = pl.BlockSpec((bt, N_pad, E), lambda b: (b, 0, 0))

    def build(single_buffer_weights):
        def wspec(shape):
            if single_buffer_weights:
                # Constant index_map: a second pipeline buffer is pure VMEM
                # waste (matters most under v7x's 64 MiB/TC budget).
                return pl.BlockSpec(shape, lambda b: (0, 0),
                                    pipeline_mode=pl.Buffered(1))
            return pl.BlockSpec(shape, lambda b: (0, 0))

        vmem_limit = _vmem_limit_bytes(bt, N_pad, E, Fdim, vmem_budget,
                                       single_buffer_weights)
        return pl.pallas_call(
            kernel,
            out_shape=jax.ShapeDtypeStruct((B, N_pad, E), x.dtype),
            grid=grid,
            in_specs=[
                x_spec,
                wspec((1, E)), wspec((1, E)),            # LN1 gamma / beta
                wspec((E, 3 * E)), wspec((1, 3 * E)),    # fused QKV weight / bias
                wspec((E, E)), wspec((1, E)),            # output projection
                wspec((1, E)), wspec((1, E)),            # LN2 gamma / beta
                wspec((E, Fdim)), wspec((1, Fdim)),      # FFN up
                wspec((Fdim, E)), wspec((1, E)),         # FFN down
            ],
            out_specs=out_spec,
            compiler_params=pltpu.CompilerParams(
                dimension_semantics=("parallel",),
                vmem_limit_bytes=vmem_limit),
            cost_estimate=cost,
        )

    args = (x_in, p["ln1_g"], p["ln1_b"], p["wqkv"], p["bqkv"], p["wp"], p["bp"],
            p["ln2_g"], p["ln2_b"], p["w1"], p["b1"], p["w2"], p["b2"])
    try:
        call = build(True)
    except (TypeError, AttributeError):
        # Only for jax versions without BlockSpec(pipeline_mode=...)/pl.Buffered;
        # real compile/runtime errors from the call below still propagate.
        call = build(False)
    out = call(*args)
    return out[:, :N, :] if N_pad != N else out


def transformer_encoder(x, blocks, *, num_heads):
    for p in blocks:
        x = transformer_block(x, p, num_heads=num_heads)
    return x


def make_block_params(key, emb_size, num_heads, expansion=4):
    """Deterministic init mimicking nn.Linear / nn.LayerNorm shapes, stored in
    both kernel format (bf16, (in, out) matmul layout, fused/permuted QKV) and
    PyTorch reference format (f32)."""
    E, H = emb_size, num_heads
    D = E // H
    Fdim = expansion * E
    ks = jax.random.split(key, 12)

    def unif(k, shape, fan_in):
        lim = 1.0 / (fan_in ** 0.5)
        w = jax.random.uniform(k, shape, jnp.float32, -lim, lim)
        # Snap to the bf16 grid so the bf16 kernel weights and the f32
        # reference weights hold identical values (only activation rounding
        # differs between the two paths).
        return w.astype(jnp.bfloat16).astype(jnp.float32)

    W_qkv = unif(ks[0], (3 * E, E), E)
    b_qkv = unif(ks[1], (3 * E,), E)
    W_proj = unif(ks[2], (E, E), E)
    b_proj = unif(ks[3], (E,), E)
    W1 = unif(ks[4], (Fdim, E), E)
    b1 = unif(ks[5], (Fdim,), E)
    W2 = unif(ks[6], (E, Fdim), Fdim)
    b2 = unif(ks[7], (E,), Fdim)
    ln1_g = (1.0 + 0.1 * jax.random.normal(ks[8], (E,))).astype(jnp.float32)
    ln1_b = (0.1 * jax.random.normal(ks[9], (E,))).astype(jnp.float32)
    ln2_g = (1.0 + 0.1 * jax.random.normal(ks[10], (E,))).astype(jnp.float32)
    ln2_b = (0.1 * jax.random.normal(ks[11], (E,))).astype(jnp.float32)

    # The qkv Linear's 3E output dim is interpreted by the PyTorch rearrange
    # 'b n (h d qkv)' as (h, d, qkv) with qkv fastest.  Regroup into one fused
    # (E_in, 3E_out) weight with columns [ q(h,d) | k(h,d) | v(h,d) ].
    Wr = W_qkv.reshape(H, D, 3, E)
    br = b_qkv.reshape(H, D, 3)
    wqkv = jnp.concatenate(
        [Wr[:, :, i, :].reshape(E, E).T for i in range(3)], axis=1)   # (E, 3E)
    bqkv = jnp.concatenate(
        [br[:, :, i].reshape(1, E) for i in range(3)], axis=1)        # (1, 3E)

    return {
        # --- kernel format (weights bf16; biases / LN params f32) ---
        "ln1_g": ln1_g.reshape(1, E), "ln1_b": ln1_b.reshape(1, E),
        "wqkv": wqkv.astype(jnp.bfloat16), "bqkv": bqkv,
        "wp": W_proj.T.astype(jnp.bfloat16), "bp": b_proj.reshape(1, E),
        "ln2_g": ln2_g.reshape(1, E), "ln2_b": ln2_b.reshape(1, E),
        "w1": W1.T.astype(jnp.bfloat16), "b1": b1.reshape(1, Fdim),
        "w2": W2.T.astype(jnp.bfloat16), "b2": b2.reshape(1, E),
        # --- PyTorch-layout f32 originals for the pure-JAX reference ---
        "_W_qkv": W_qkv, "_b_qkv": b_qkv, "_W_proj": W_proj, "_b_proj": b_proj,
        "_W1": W1, "_b1": b1, "_W2": W2, "_b2": b2,
        "_ln1_g": ln1_g, "_ln1_b": ln1_b, "_ln2_g": ln2_g, "_ln2_b": ln2_b,
    }


def reference_block(x, p, *, num_heads):
    """Pure-JAX f32 replica of one PyTorch TransformerEncoderBlock."""
    B, N, E = x.shape
    H = num_heads
    D = E // H

    def ln(z, g, b):
        mu = z.mean(-1, keepdims=True)
        var = ((z - mu) ** 2).mean(-1, keepdims=True)
        return (z - mu) / jnp.sqrt(var + 1e-5) * g + b

    h = ln(x, p["_ln1_g"], p["_ln1_b"])
    qkv = h @ p["_W_qkv"].T + p["_b_qkv"]                    # (B, N, 3E)
    qkv = qkv.reshape(B, N, H, D, 3)                         # (h, d, qkv) split
    qkv = jnp.transpose(qkv, (4, 0, 2, 1, 3))                # (3, B, H, N, D)
    q, k, v = qkv[0], qkv[1], qkv[2]
    s = jnp.einsum("bhqd,bhkd->bhqk", q, k)
    att = jax.nn.softmax(s, axis=-1) / (E ** 0.5)            # scale AFTER softmax
    out = jnp.einsum("bhal,bhlv->bhav", att, v)
    out = jnp.transpose(out, (0, 2, 1, 3)).reshape(B, N, E)  # b n (h d)
    x = x + (out @ p["_W_proj"].T + p["_b_proj"])

    h2 = ln(x, p["_ln2_g"], p["_ln2_b"])
    f = jax.nn.gelu(h2 @ p["_W1"].T + p["_b1"], approximate=False)
    x = x + (f @ p["_W2"].T + p["_b2"])
    return x


if __name__ == "__main__":
    # Small shapes consistent with the module: batch=2, seq (num patches)=8,
    # emb_size=32, heads=4, depth=2, ffn expansion=4.
    B, N, E, H, DEPTH = 2, 8, 32, 4, 2

    key = jax.random.PRNGKey(0)
    kx, kp = jax.random.split(key)
    x = jax.random.normal(kx, (B, N, E), jnp.float32)
    blocks = [make_block_params(k, E, H) for k in jax.random.split(kp, DEPTH)]

    y = transformer_encoder(x, blocks, num_heads=H)
    y = jax.block_until_ready(y)

    # Pure-JAX f32 reference over the same weights (kernel uses bf16 matmul
    # operands + approx reciprocal + tanh-GELU, hence the tolerance).
    y_ref = x
    for p in blocks:
        y_ref = reference_block(y_ref, p, num_heads=H)

    assert jnp.allclose(y, y_ref, atol=5e-2, rtol=5e-2), "mismatch vs reference"
    print("KERNEL_OK")
</pallas_src>

<mosaic_0001>
module attributes {stable_mosaic.version = 11 : i64} {
  func.func @encoder_block_kernel(%arg0: i32, %arg1: memref<1x8x32xf32, #tpu.memory_space<vmem>>, %arg2: memref<1x32xf32, #tpu.memory_space<vmem>>, %arg3: memref<1x32xf32, #tpu.memory_space<vmem>>, %arg4: memref<32x96xbf16, #tpu.memory_space<vmem>>, %arg5: memref<1x96xf32, #tpu.memory_space<vmem>>, %arg6: memref<32x32xbf16, #tpu.memory_space<vmem>>, %arg7: memref<1x32xf32, #tpu.memory_space<vmem>>, %arg8: memref<1x32xf32, #tpu.memory_space<vmem>>, %arg9: memref<1x32xf32, #tpu.memory_space<vmem>>, %arg10: memref<32x128xbf16, #tpu.memory_space<vmem>>, %arg11: memref<1x128xf32, #tpu.memory_space<vmem>>, %arg12: memref<128x32xbf16, #tpu.memory_space<vmem>>, %arg13: memref<1x32xf32, #tpu.memory_space<vmem>>, %arg14: memref<1x8x32xf32, #tpu.memory_space<vmem>>) attributes {dimension_semantics = [#tpu.dimension_semantics<parallel>], iteration_bounds = array<i64: 2>, scalar_prefetch = 0 : i64, scratch_operands = 0 : i64, tpu.core_type = #tpu.core_type<tc>, window_params = [{transform_indices = @transform_0, window_bounds = array<i64: 1, 8, 32>}, {pipeline_mode = #tpu.pipeline_mode<synchronous>, transform_indices = @transform_1, window_bounds = array<i64: 1, 32>}, {pipeline_mode = #tpu.pipeline_mode<synchronous>, transform_indices = @transform_2, window_bounds = array<i64: 1, 32>}, {pipeline_mode = #tpu.pipeline_mode<synchronous>, transform_indices = @transform_3, window_bounds = array<i64: 32, 96>}, {pipeline_mode = #tpu.pipeline_mode<synchronous>, transform_indices = @transform_4, window_bounds = array<i64: 1, 96>}, {pipeline_mode = #tpu.pipeline_mode<synchronous>, transform_indices = @transform_5, window_bounds = array<i64: 32, 32>}, {pipeline_mode = #tpu.pipeline_mode<synchronous>, transform_indices = @transform_6, window_bounds = array<i64: 1, 32>}, {pipeline_mode = #tpu.pipeline_mode<synchronous>, transform_indices = @transform_7, window_bounds = array<i64: 1, 32>}, {pipeline_mode = #tpu.pipeline_mode<synchronous>, transform_indices = @transform_8, window_bounds = array<i64: 1, 32>}, {pipeline_mode = #tpu.pipeline_mode<synchronous>, transform_indices = @transform_9, window_bounds = array<i64: 32, 128>}, {pipeline_mode = #tpu.pipeline_mode<synchronous>, transform_indices = @transform_10, window_bounds = array<i64: 1, 128>}, {pipeline_mode = #tpu.pipeline_mode<synchronous>, transform_indices = @transform_11, window_bounds = array<i64: 128, 32>}, {pipeline_mode = #tpu.pipeline_mode<synchronous>, transform_indices = @transform_12, window_bounds = array<i64: 1, 32>}, {transform_indices = @transform_13, window_bounds = array<i64: 1, 8, 32>}]} {
    %c0 = arith.constant 0 : index
    %c0_0 = arith.constant 0 : index
    %c0_1 = arith.constant 0 : index
    %0 = vector.load %arg1[%c0, %c0_0, %c0_1] : memref<1x8x32xf32, #tpu.memory_space<vmem>>, vector<1x8x32xf32>
    %1 = vector.shape_cast %0 : vector<1x8x32xf32> to vector<8x32xf32>
    %c0_2 = arith.constant 0 : index
    %c0_3 = arith.constant 0 : index
    %2 = vector.load %arg2[%c0_2, %c0_3] : memref<1x32xf32, #tpu.memory_space<vmem>>, vector<1x32xf32>
    %c0_4 = arith.constant 0 : index
    %c0_5 = arith.constant 0 : index
    %3 = vector.load %arg3[%c0_4, %c0_5] : memref<1x32xf32, #tpu.memory_space<vmem>>, vector<1x32xf32>
    %cst = arith.constant dense<0.000000e+00> : vector<8xf32>
    %4 = vector.multi_reduction <add>, %1, %cst [1] : vector<8x32xf32> to vector<8xf32>
    %5 = vector.shape_cast %4 : vector<8xf32> to vector<8x1xf32>
    %cst_6 = arith.constant 3.200000e+01 : f32
    %6 = vector.broadcast %cst_6 : f32 to vector<8x1xf32>
    %7 = arith.divf %5, %6 : vector<8x1xf32>
    %8 = vector.broadcast %7 : vector<8x1xf32> to vector<8x32xf32>
    %9 = arith.subf %1, %8 : vector<8x32xf32>
    %10 = arith.mulf %9, %9 : vector<8x32xf32>
    %cst_7 = arith.constant dense<0.000000e+00> : vector<8xf32>
    %11 = vector.multi_reduction <add>, %10, %cst_7 [1] : vector<8x32xf32> to vector<8xf32>
    %12 = vector.shape_cast %11 : vector<8xf32> to vector<8x1xf32>
    %cst_8 = arith.constant 3.200000e+01 : f32
    %13 = vector.broadcast %cst_8 : f32 to vector<8x1xf32>
    %14 = arith.divf %12, %13 : vector<8x1xf32>
    %cst_9 = arith.constant 9.99999974E-6 : f32
    %15 = vector.broadcast %cst_9 : f32 to vector<8x1xf32>
    %16 = arith.addf %14, %15 : vector<8x1xf32>
    %17 = math.rsqrt %16 : vector<8x1xf32>
    %18 = vector.broadcast %17 : vector<8x1xf32> to vector<8x32xf32>
    %19 = arith.mulf %9, %18 : vector<8x32xf32>
    %20 = vector.broadcast %2 : vector<1x32xf32> to vector<8x32xf32>
    %21 = arith.mulf %19, %20 : vector<8x32xf32>
    %22 = vector.broadcast %3 : vector<1x32xf32> to vector<8x32xf32>
    %23 = arith.addf %21, %22 : vector<8x32xf32>
    %24 = arith.truncf %23 : vector<8x32xf32> to vector<8x32xbf16>
    %c0_10 = arith.constant 0 : index
    %c0_11 = arith.constant 0 : index
    %25 = vector.load %arg4[%c0_10, %c0_11] : memref<32x96xbf16, #tpu.memory_space<vmem>>, vector<32x96xbf16>
    %cst_12 = arith.constant dense<0.000000e+00> : vector<8x96xf32>
    %26 = tpu.matmul %24, %25, %cst_12 {dimension_numbers = #tpu.dot_dimension_numbers<[1], [0], [0], [1], [0, 0, 1, 1], [], []>} : vector<8x32xbf16>, vector<32x96xbf16>, vector<8x96xf32> -> vector<8x96xf32>
    %c0_13 = arith.constant 0 : index
    %c0_14 = arith.constant 0 : index
    %27 = vector.load %arg5[%c0_13, %c0_14] : memref<1x96xf32, #tpu.memory_space<vmem>>, vector<1x96xf32>
    %28 = vector.broadcast %27 : vector<1x96xf32> to vector<8x96xf32>
    %29 = arith.addf %26, %28 : vector<8x96xf32>
    %30 = arith.truncf %29 : vector<8x96xf32> to vector<8x96xbf16>
    %31 = vector.extract_strided_slice %30 {offsets = [0, 0], sizes = [8, 8], strides = [1, 1]} : vector<8x96xbf16> to vector<8x8xbf16>
    %32 = vector.shape_cast %31 : vector<8x8xbf16> to vector<1x8x8xbf16>
    %33 = vector.extract_strided_slice %30 {offsets = [0, 32], sizes = [8, 8], strides = [1, 1]} : vector<8x96xbf16> to vector<8x8xbf16>
    %34 = vector.shape_cast %33 : vector<8x8xbf16> to vector<1x8x8xbf16>
    %35 = vector.extract_strided_slice %30 {offsets = [0, 64], sizes = [8, 8], strides = [1, 1]} : vector<8x96xbf16> to vector<8x8xbf16>
    %36 = vector.shape_cast %35 : vector<8x8xbf16> to vector<1x8x8xbf16>
    %cst_15 = arith.constant dense<0.000000e+00> : vector<1x8x8xf32>
    %37 = tpu.matmul %32, %34, %cst_15 {dimension_numbers = #tpu.dot_dimension_numbers<[2], [2], [1], [1], [0, 0, 0, 1, 1, 1], [0], [0]>} : vector<1x8x8xbf16>, vector<1x8x8xbf16>, vector<1x8x8xf32> -> vector<1x8x8xf32>
    %cst_16 = arith.constant dense<0xFF800000> : vector<1x8xf32>
    %38 = vector.multi_reduction <maximumf>, %37, %cst_16 [2] : vector<1x8x8xf32> to vector<1x8xf32>
    %39 = vector.shape_cast %38 : vector<1x8xf32> to vector<1x8x1xf32>
    %40 = vector.broadcast %39 : vector<1x8x1xf32> to vector<1x8x8xf32>
    %41 = arith.subf %37, %40 : vector<1x8x8xf32>
    %42 = math.exp %41 : vector<1x8x8xf32>
    %cst_17 = arith.constant dense<0.000000e+00> : vector<1x8xf32>
    %43 = vector.multi_reduction <add>, %42, %cst_17 [2] : vector<1x8x8xf32> to vector<1x8xf32>
    %44 = vector.shape_cast %43 : vector<1x8xf32> to vector<1x8x1xf32>
    %cst_18 = arith.constant 5.65685415 : f32
    %45 = vector.broadcast %cst_18 : f32 to vector<1x8x1xf32>
    %46 = arith.mulf %44, %45 : vector<1x8x1xf32>
    %47 = tpu.reciprocal %46 {approx = true} : vector<1x8x1xf32> -> vector<1x8x1xf32>
    %48 = vector.broadcast %47 : vector<1x8x1xf32> to vector<1x8x8xf32>
    %49 = arith.mulf %42, %48 : vector<1x8x8xf32>
    %50 = arith.truncf %49 : vector<1x8x8xf32> to vector<1x8x8xbf16>
    %cst_19 = arith.constant dense<0.000000e+00> : vector<1x8x8xf32>
    %51 = tpu.matmul %50, %36, %cst_19 {dimension_numbers = #tpu.dot_dimension_numbers<[2], [1], [1], [2], [0, 0, 0, 1, 1, 2], [0], [0]>} : vector<1x8x8xbf16>, vector<1x8x8xbf16>, vector<1x8x8xf32> -> vector<1x8x8xf32>
    %52 = arith.truncf %51 : vector<1x8x8xf32> to vector<1x8x8xbf16>
    %53 = vector.extract_strided_slice %30 {offsets = [0, 8], sizes = [8, 8], strides = [1, 1]} : vector<8x96xbf16> to vector<8x8xbf16>
    %54 = vector.shape_cast %53 : vector<8x8xbf16> to vector<1x8x8xbf16>
    %55 = vector.extract_strided_slice %30 {offsets = [0, 40], sizes = [8, 8], strides = [1, 1]} : vector<8x96xbf16> to vector<8x8xbf16>
    %56 = vector.shape_cast %55 : vector<8x8xbf16> to vector<1x8x8xbf16>
    %57 = vector.extract_strided_slice %30 {offsets = [0, 72], sizes = [8, 8], strides = [1, 1]} : vector<8x96xbf16> to vector<8x8xbf16>
    %58 = vector.shape_cast %57 : vector<8x8xbf16> to vector<1x8x8xbf16>
    %cst_20 = arith.constant dense<0.000000e+00> : vector<1x8x8xf32>
    %59 = tpu.matmul %54, %56, %cst_20 {dimension_numbers = #tpu.dot_dimension_numbers<[2], [2], [1], [1], [0, 0, 0, 1, 1, 1], [0], [0]>} : vector<1x8x8xbf16>, vector<1x8x8xbf16>, vector<1x8x8xf32> -> vector<1x8x8xf32>
    %cst_21 = arith.constant dense<0xFF800000> : vector<1x8xf32>
    %60 = vector.multi_reduction <maximumf>, %59, %cst_21 [2] : vector<1x8x8xf32> to vector<1x8xf32>
    %61 = vector.shape_cast %60 : vector<1x8xf32> to vector<1x8x1xf32>
    %62 = vector.broadcast %61 : vector<1x8x1xf32> to vector<1x8x8xf32>
    %63 = arith.subf %59, %62 : vector<1x8x8xf32>
    %64 = math.exp %63 : vector<1x8x8xf32>
    %cst_22 = arith.constant dense<0.000000e+00> : vector<1x8xf32>
    %65 = vector.multi_reduction <add>, %64, %cst_22 [2] : vector<1x8x8xf32> to vector<1x8xf32>
    %66 = vector.shape_cast %65 : vector<1x8xf32> to vector<1x8x1xf32>
    %cst_23 = arith.constant 5.65685415 : f32
    %67 = vector.broadcast %cst_23 : f32 to vector<1x8x1xf32>
    %68 = arith.mulf %66, %67 : vector<1x8x1xf32>
    %69 = tpu.reciprocal %68 {approx = true} : vector<1x8x1xf32> -> vector<1x8x1xf32>
    %70 = vector.broadcast %69 : vector<1x8x1xf32> to vector<1x8x8xf32>
    %71 = arith.mulf %64, %70 : vector<1x8x8xf32>
    %72 = arith.truncf %71 : vector<1x8x8xf32> to vector<1x8x8xbf16>
    %cst_24 = arith.constant dense<0.000000e+00> : vector<1x8x8xf32>
    %73 = tpu.matmul %72, %58, %cst_24 {dimension_numbers = #tpu.dot_dimension_numbers<[2], [1], [1], [2], [0, 0, 0, 1, 1, 2], [0], [0]>} : vector<1x8x8xbf16>, vector<1x8x8xbf16>, vector<1x8x8xf32> -> vector<1x8x8xf32>
    %74 = arith.truncf %73 : vector<1x8x8xf32> to vector<1x8x8xbf16>
    %75 = vector.extract_strided_slice %30 {offsets = [0, 16], sizes = [8, 8], strides = [1, 1]} : vector<8x96xbf16> to vector<8x8xbf16>
    %76 = vector.shape_cast %75 : vector<8x8xbf16> to vector<1x8x8xbf16>
    %77 = vector.extract_strided_slice %30 {offsets = [0, 48], sizes = [8, 8], strides = [1, 1]} : vector<8x96xbf16> to vector<8x8xbf16>
    %78 = vector.shape_cast %77 : vector<8x8xbf16> to vector<1x8x8xbf16>
    %79 = vector.extract_strided_slice %30 {offsets = [0, 80], sizes = [8, 8], strides = [1, 1]} : vector<8x96xbf16> to vector<8x8xbf16>
    %80 = vector.shape_cast %79 : vector<8x8xbf16> to vector<1x8x8xbf16>
    %cst_25 = arith.constant dense<0.000000e+00> : vector<1x8x8xf32>
    %81 = tpu.matmul %76, %78, %cst_25 {dimension_numbers = #tpu.dot_dimension_numbers<[2], [2], [1], [1], [0, 0, 0, 1, 1, 1], [0], [0]>} : vector<1x8x8xbf16>, vector<1x8x8xbf16>, vector<1x8x8xf32> -> vector<1x8x8xf32>
    %cst_26 = arith.constant dense<0xFF800000> : vector<1x8xf32>
    %82 = vector.multi_reduction <maximumf>, %81, %cst_26 [2] : vector<1x8x8xf32> to vector<1x8xf32>
    %83 = vector.shape_cast %82 : vector<1x8xf32> to vector<1x8x1xf32>
    %84 = vector.broadcast %83 : vector<1x8x1xf32> to vector<1x8x8xf32>
    %85 = arith.subf %81, %84 : vector<1x8x8xf32>
    %86 = math.exp %85 : vector<1x8x8xf32>
    %cst_27 = arith.constant dense<0.000000e+00> : vector<1x8xf32>
    %87 = vector.multi_reduction <add>, %86, %cst_27 [2] : vector<1x8x8xf32> to vector<1x8xf32>
    %88 = vector.shape_cast %87 : vector<1x8xf32> to vector<1x8x1xf32>
    %cst_28 = arith.constant 5.65685415 : f32
    %89 = vector.broadcast %cst_28 : f32 to vector<1x8x1xf32>
    %90 = arith.mulf %88, %89 : vector<1x8x1xf32>
    %91 = tpu.reciprocal %90 {approx = true} : vector<1x8x1xf32> -> vector<1x8x1xf32>
    %92 = vector.broadcast %91 : vector<1x8x1xf32> to vector<1x8x8xf32>
    %93 = arith.mulf %86, %92 : vector<1x8x8xf32>
    %94 = arith.truncf %93 : vector<1x8x8xf32> to vector<1x8x8xbf16>
    %cst_29 = arith.constant dense<0.000000e+00> : vector<1x8x8xf32>
    %95 = tpu.matmul %94, %80, %cst_29 {dimension_numbers = #tpu.dot_dimension_numbers<[2], [1], [1], [2], [0, 0, 0, 1, 1, 2], [0], [0]>} : vector<1x8x8xbf16>, vector<1x8x8xbf16>, vector<1x8x8xf32> -> vector<1x8x8xf32>
    %96 = arith.truncf %95 : vector<1x8x8xf32> to vector<1x8x8xbf16>
    %97 = vector.extract_strided_slice %30 {offsets = [0, 24], sizes = [8, 8], strides = [1, 1]} : vector<8x96xbf16> to vector<8x8xbf16>
    %98 = vector.shape_cast %97 : vector<8x8xbf16> to vector<1x8x8xbf16>
    %99 = vector.extract_strided_slice %30 {offsets = [0, 56], sizes = [8, 8], strides = [1, 1]} : vector<8x96xbf16> to vector<8x8xbf16>
    %100 = vector.shape_cast %99 : vector<8x8xbf16> to vector<1x8x8xbf16>
    %101 = vector.extract_strided_slice %30 {offsets = [0, 88], sizes = [8, 8], strides = [1, 1]} : vector<8x96xbf16> to vector<8x8xbf16>
    %102 = vector.shape_cast %101 : vector<8x8xbf16> to vector<1x8x8xbf16>
    %cst_30 = arith.constant dense<0.000000e+00> : vector<1x8x8xf32>
    %103 = tpu.matmul %98, %100, %cst_30 {dimension_numbers = #tpu.dot_dimension_numbers<[2], [2], [1], [1], [0, 0, 0, 1, 1, 1], [0], [0]>} : vector<1x8x8xbf16>, vector<1x8x8xbf16>, vector<1x8x8xf32> -> vector<1x8x8xf32>
    %cst_31 = arith.constant dense<0xFF800000> : vector<1x8xf32>
    %104 = vector.multi_reduction <maximumf>, %103, %cst_31 [2] : vector<1x8x8xf32> to vector<1x8xf32>
    %105 = vector.shape_cast %104 : vector<1x8xf32> to vector<1x8x1xf32>
    %106 = vector.broadcast %105 : vector<1x8x1xf32> to vector<1x8x8xf32>
    %107 = arith.subf %103, %106 : vector<1x8x8xf32>
    %108 = math.exp %107 : vector<1x8x8xf32>
    %cst_32 = arith.constant dense<0.000000e+00> : vector<1x8xf32>
    %109 = vector.multi_reduction <add>, %108, %cst_32 [2] : vector<1x8x8xf32> to vector<1x8xf32>
    %110 = vector.shape_cast %109 : vector<1x8xf32> to vector<1x8x1xf32>
    %cst_33 = arith.constant 5.65685415 : f32
    %111 = vector.broadcast %cst_33 : f32 to vector<1x8x1xf32>
    %112 = arith.mulf %110, %111 : vector<1x8x1xf32>
    %113 = tpu.reciprocal %112 {approx = true} : vector<1x8x1xf32> -> vector<1x8x1xf32>
    %114 = vector.broadcast %113 : vector<1x8x1xf32> to vector<1x8x8xf32>
    %115 = arith.mulf %108, %114 : vector<1x8x8xf32>
    %116 = arith.truncf %115 : vector<1x8x8xf32> to vector<1x8x8xbf16>
    %cst_34 = arith.constant dense<0.000000e+00> : vector<1x8x8xf32>
    %117 = tpu.matmul %116, %102, %cst_34 {dimension_numbers = #tpu.dot_dimension_numbers<[2], [1], [1], [2], [0, 0, 0, 1, 1, 2], [0], [0]>} : vector<1x8x8xbf16>, vector<1x8x8xbf16>, vector<1x8x8xf32> -> vector<1x8x8xf32>
    %118 = arith.truncf %117 : vector<1x8x8xf32> to vector<1x8x8xbf16>
    %119 = tpu.concatenate %52, %74, %96, %118 in 2 : vector<1x8x8xbf16>, vector<1x8x8xbf16>, vector<1x8x8xbf16>, vector<1x8x8xbf16> -> vector<1x8x32xbf16>
    %120 = vector.shape_cast %119 : vector<1x8x32xbf16> to vector<8x32xbf16>
    %c0_35 = arith.constant 0 : index
    %c0_36 = arith.constant 0 : index
    %121 = vector.load %arg6[%c0_35, %c0_36] : memref<32x32xbf16, #tpu.memory_space<vmem>>, vector<32x32xbf16>
    %cst_37 = arith.constant dense<0.000000e+00> : vector<8x32xf32>
    %122 = tpu.matmul %120, %121, %cst_37 {dimension_numbers = #tpu.dot_dimension_numbers<[1], [0], [0], [1], [0, 0, 1, 1], [], []>} : vector<8x32xbf16>, vector<32x32xbf16>, vector<8x32xf32> -> vector<8x32xf32>
    %c0_38 = arith.constant 0 : index
    %c0_39 = arith.constant 0 : index
    %123 = vector.load %arg7[%c0_38, %c0_39] : memref<1x32xf32, #tpu.memory_space<vmem>>, vector<1x32xf32>
    %124 = vector.broadcast %123 : vector<1x32xf32> to vector<8x32xf32>
    %125 = arith.addf %122, %124 : vector<8x32xf32>
    %126 = arith.addf %1, %125 : vector<8x32xf32>
    %c0_40 = arith.constant 0 : index
    %c0_41 = arith.constant 0 : index
    %127 = vector.load %arg8[%c0_40, %c0_41] : memref<1x32xf32, #tpu.memory_space<vmem>>, vector<1x32xf32>
    %c0_42 = arith.constant 0 : index
    %c0_43 = arith.constant 0 : index
    %128 = vector.load %arg9[%c0_42, %c0_43] : memref<1x32xf32, #tpu.memory_space<vmem>>, vector<1x32xf32>
    %cst_44 = arith.constant dense<0.000000e+00> : vector<8xf32>
    %129 = vector.multi_reduction <add>, %126, %cst_44 [1] : vector<8x32xf32> to vector<8xf32>
    %130 = vector.shape_cast %129 : vector<8xf32> to vector<8x1xf32>
    %cst_45 = arith.constant 3.200000e+01 : f32
    %131 = vector.broadcast %cst_45 : f32 to vector<8x1xf32>
    %132 = arith.divf %130, %131 : vector<8x1xf32>
    %133 = vector.broadcast %132 : vector<8x1xf32> to vector<8x32xf32>
    %134 = arith.subf %126, %133 : vector<8x32xf32>
    %135 = arith.mulf %134, %134 : vector<8x32xf32>
    %cst_46 = arith.constant dense<0.000000e+00> : vector<8xf32>
    %136 = vector.multi_reduction <add>, %135, %cst_46 [1] : vector<8x32xf32> to vector<8xf32>
    %137 = vector.shape_cast %136 : vector<8xf32> to vector<8x1xf32>
    %cst_47 = arith.constant 3.200000e+01 : f32
    %138 = vector.broadcast %cst_47 : f32 to vector<8x1xf32>
    %139 = arith.divf %137, %138 : vector<8x1xf32>
    %cst_48 = arith.constant 9.99999974E-6 : f32
    %140 = vector.broadcast %cst_48 : f32 to vector<8x1xf32>
    %141 = arith.addf %139, %140 : vector<8x1xf32>
    %142 = math.rsqrt %141 : vector<8x1xf32>
    %143 = vector.broadcast %142 : vector<8x1xf32> to vector<8x32xf32>
    %144 = arith.mulf %134, %143 : vector<8x32xf32>
    %145 = vector.broadcast %127 : vector<1x32xf32> to vector<8x32xf32>
    %146 = arith.mulf %144, %145 : vector<8x32xf32>
    %147 = vector.broadcast %128 : vector<1x32xf32> to vector<8x32xf32>
    %148 = arith.addf %146, %147 : vector<8x32xf32>
    %149 = arith.truncf %148 : vector<8x32xf32> to vector<8x32xbf16>
    %c0_49 = arith.constant 0 : index
    %c0_50 = arith.constant 0 : index
    %150 = vector.load %arg13[%c0_49, %c0_50] : memref<1x32xf32, #tpu.memory_space<vmem>>, vector<1x32xf32>
    %151 = vector.broadcast %150 : vector<1x32xf32> to vector<8x32xf32>
    %152 = arith.addf %126, %151 : vector<8x32xf32>
    %c0_51 = arith.constant 0 : index
    %c0_52 = arith.constant 0 : index
    %153 = vector.load %arg10[%c0_51, %c0_52] : memref<32x128xbf16, #tpu.memory_space<vmem>>, vector<32x128xbf16>
    %cst_53 = arith.constant dense<0.000000e+00> : vector<8x128xf32>
    %154 = tpu.matmul %149, %153, %cst_53 {dimension_numbers = #tpu.dot_dimension_numbers<[1], [0], [0], [1], [0, 0, 1, 1], [], []>} : vector<8x32xbf16>, vector<32x128xbf16>, vector<8x128xf32> -> vector<8x128xf32>
    %c0_54 = arith.constant 0 : index
    %c0_55 = arith.constant 0 : index
    %155 = vector.load %arg11[%c0_54, %c0_55] : memref<1x128xf32, #tpu.memory_space<vmem>>, vector<1x128xf32>
    %156 = vector.broadcast %155 : vector<1x128xf32> to vector<8x128xf32>
    %157 = arith.addf %154, %156 : vector<8x128xf32>
    %cst_56 = arith.constant 5.000000e-01 : f32
    %158 = vector.broadcast %cst_56 : f32 to vector<8x128xf32>
    %159 = arith.mulf %158, %157 : vector<8x128xf32>
    %cst_57 = arith.constant 4.471500e-02 : f32
    %160 = vector.broadcast %cst_57 : f32 to vector<8x128xf32>
    %161 = arith.mulf %160, %157 : vector<8x128xf32>
    %162 = arith.mulf %161, %157 : vector<8x128xf32>
    %163 = arith.mulf %162, %157 : vector<8x128xf32>
    %164 = arith.addf %157, %163 : vector<8x128xf32>
    %cst_58 = arith.constant 0.797884583 : f32
    %165 = vector.broadcast %cst_58 : f32 to vector<8x128xf32>
    %166 = arith.mulf %165, %164 : vector<8x128xf32>
    %167 = math.tanh %166 : vector<8x128xf32>
    %cst_59 = arith.constant 1.000000e+00 : f32
    %168 = vector.broadcast %cst_59 : f32 to vector<8x128xf32>
    %169 = arith.addf %168, %167 : vector<8x128xf32>
    %170 = arith.mulf %159, %169 : vector<8x128xf32>
    %171 = arith.truncf %170 : vector<8x128xf32> to vector<8x128xbf16>
    %c0_60 = arith.constant 0 : index
    %c0_61 = arith.constant 0 : index
    %172 = vector.load %arg12[%c0_60, %c0_61] : memref<128x32xbf16, #tpu.memory_space<vmem>>, vector<128x32xbf16>
    %cst_62 = arith.constant dense<0.000000e+00> : vector<8x32xf32>
    %173 = tpu.matmul %171, %172, %cst_62 {dimension_numbers = #tpu.dot_dimension_numbers<[1], [0], [0], [1], [0, 0, 1, 1], [], []>} : vector<8x128xbf16>, vector<128x32xbf16>, vector<8x32xf32> -> vector<8x32xf32>
    %174 = arith.addf %152, %173 : vector<8x32xf32>
    %175 = vector.shape_cast %174 : vector<8x32xf32> to vector<1x8x32xf32>
    %c0_63 = arith.constant 0 : index
    %c0_64 = arith.constant 0 : index
    %c0_65 = arith.constant 0 : index
    %176 = vector.load %arg14[%c0_63, %c0_64, %c0_65] : memref<1x8x32xf32, #tpu.memory_space<vmem>>, vector<1x8x32xf32>
    tpu.vector_store %arg14[%c0_63, %c0_64, %c0_65], %175 {strides = array<i32>} : memref<1x8x32xf32, #tpu.memory_space<vmem>>, vector<1x8x32xf32>,
    return
  }
  func.func @transform_0(%arg0: i32) -> (i32, i32, i32) {
    %c0_i32 = arith.constant 0 : i32
    %c0_i32_0 = arith.constant 0 : i32
    %c0_i32_1 = arith.constant 0 : i32
    return %arg0, %c0_i32, %c0_i32_0 : i32, i32, i32
  }
  func.func @transform_1(%arg0: i32) -> (i32, i32) {
    %c0_i32 = arith.constant 0 : i32
    %c0_i32_0 = arith.constant 0 : i32
    %c0_i32_1 = arith.constant 0 : i32
    return %c0_i32, %c0_i32_0 : i32, i32
  }
  func.func @transform_2(%arg0: i32) -> (i32, i32) {
    %c0_i32 = arith.constant 0 : i32
    %c0_i32_0 = arith.constant 0 : i32
    %c0_i32_1 = arith.constant 0 : i32
    return %c0_i32, %c0_i32_0 : i32, i32
  }
  func.func @transform_3(%arg0: i32) -> (i32, i32) {
    %c0_i32 = arith.constant 0 : i32
    %c0_i32_0 = arith.constant 0 : i32
    %c0_i32_1 = arith.constant 0 : i32
    return %c0_i32, %c0_i32_0 : i32, i32
  }
  func.func @transform_4(%arg0: i32) -> (i32, i32) {
    %c0_i32 = arith.constant 0 : i32
    %c0_i32_0 = arith.constant 0 : i32
    %c0_i32_1 = arith.constant 0 : i32
    return %c0_i32, %c0_i32_0 : i32, i32
  }
  func.func @transform_5(%arg0: i32) -> (i32, i32) {
    %c0_i32 = arith.constant 0 : i32
    %c0_i32_0 = arith.constant 0 : i32
    %c0_i32_1 = arith.constant 0 : i32
    return %c0_i32, %c0_i32_0 : i32, i32
  }
  func.func @transform_6(%arg0: i32) -> (i32, i32) {
    %c0_i32 = arith.constant 0 : i32
    %c0_i32_0 = arith.constant 0 : i32
    %c0_i32_1 = arith.constant 0 : i32
    return %c0_i32, %c0_i32_0 : i32, i32
  }
  func.func @transform_7(%arg0: i32) -> (i32, i32) {
    %c0_i32 = arith.constant 0 : i32
    %c0_i32_0 = arith.constant 0 : i32
    %c0_i32_1 = arith.constant 0 : i32
    return %c0_i32, %c0_i32_0 : i32, i32
  }
  func.func @transform_8(%arg0: i32) -> (i32, i32) {
    %c0_i32 = arith.constant 0 : i32
    %c0_i32_0 = arith.constant 0 : i32
    %c0_i32_1 = arith.constant 0 : i32
    return %c0_i32, %c0_i32_0 : i32, i32
  }
  func.func @transform_9(%arg0: i32) -> (i32, i32) {
    %c0_i32 = arith.constant 0 : i32
    %c0_i32_0 = arith.constant 0 : i32
    %c0_i32_1 = arith.constant 0 : i32
    return %c0_i32, %c0_i32_0 : i32, i32
  }
  func.func @transform_10(%arg0: i32) -> (i32, i32) {
    %c0_i32 = arith.constant 0 : i32
    %c0_i32_0 = arith.constant 0 : i32
    %c0_i32_1 = arith.constant 0 : i32
    return %c0_i32, %c0_i32_0 : i32, i32
  }
  func.func @transform_11(%arg0: i32) -> (i32, i32) {
    %c0_i32 = arith.constant 0 : i32
    %c0_i32_0 = arith.constant 0 : i32
    %c0_i32_1 = arith.constant 0 : i32
    return %c0_i32, %c0_i32_0 : i32, i32
  }
  func.func @transform_12(%arg0: i32) -> (i32, i32) {
    %c0_i32 = arith.constant 0 : i32
    %c0_i32_0 = arith.constant 0 : i32
    %c0_i32_1 = arith.constant 0 : i32
    return %c0_i32, %c0_i32_0 : i32, i32
  }
  func.func @transform_13(%arg0: i32) -> (i32, i32, i32) {
    %c0_i32 = arith.constant 0 : i32
    %c0_i32_0 = arith.constant 0 : i32
    %c0_i32_1 = arith.constant 0 : i32
    return %arg0, %c0_i32, %c0_i32_0 : i32, i32, i32
  }
}

</mosaic_0001>

<llo_original>
// kernel: tpu_custom_call.1
$region0: #{tpu_custom_call.1}
  #allocation0 [shape = 'u32[]', space=smem, size = 0x4, offset = 0x4, fixed_abs, tag = 'smem constant byte address 0x4 - core index']
  #allocation1 [shape = 'u32[144,128]{1,0:T(1,128)}', space=vmem, size = 0x12000, scoped, tag = 'internal scratch']
  %s0 = inlined_call_operand.vmem [shape: f32[2,8,32], index: 0, kind: input, shape index: {}]
  %s1 = inlined_call_operand.vmem [shape: f32[1,32], index: 1, kind: input, shape index: {}]
  %s2 = inlined_call_operand.vmem [shape: f32[1,32], index: 2, kind: input, shape index: {}]
  %s3 = inlined_call_operand.vmem [shape: bf16[32,96], index: 3, kind: input, shape index: {}]
  %s4 = inlined_call_operand.vmem [shape: f32[1,96], index: 4, kind: input, shape index: {}]
  %s5 = inlined_call_operand.vmem [shape: bf16[32,32], index: 5, kind: input, shape index: {}]
  %s6 = inlined_call_operand.vmem [shape: f32[1,32], index: 6, kind: input, shape index: {}]
  %s7 = inlined_call_operand.vmem [shape: f32[1,32], index: 7, kind: input, shape index: {}]
  %s8 = inlined_call_operand.vmem [shape: f32[1,32], index: 8, kind: input, shape index: {}]
  %s9 = inlined_call_operand.vmem [shape: bf16[32,128], index: 9, kind: input, shape index: {}]
  %s10 = inlined_call_operand.vmem [shape: f32[1,128], index: 10, kind: input, shape index: {}]
  %s11 = inlined_call_operand.vmem [shape: bf16[128,32], index: 11, kind: input, shape index: {}]
  %s12 = inlined_call_operand.vmem [shape: f32[1,32], index: 12, kind: input, shape index: {}]
  %s13 = inlined_call_operand.hbm [shape: f32[2,8,32], index: 13, kind: output, shape index: {}]
  %s14 = sld [smem:[#allocation0]]
  $region85: #{tpu_custom_call.1} parent=0
    _
  %s16 = ssub.s32 1, %s14
  %s17 = scalar_select 0, %s16, %s14
  $region1: #{tpu_custom_call.1} parent=0
    #allocation2 [shape = 'u8[8192]{0}', space=vmem, size = 0x2000, scoped, tag = 'output window, operand 0']
    #allocation3 [shape = 's32[2]{0}', space=sflag, size = 0x8, scoped, tag = 'scoped memory for tpu_custom_call.1']
    %18 = vsyncpa [#allocation3], 0
    %s19 = scalar_lea.sflag [#allocation3], 1
    %20 = vsyncpa %s19, 0
    loop: start=0, step=1, limit=4
    $region2: #{tpu_custom_call.1} parent=1 // loop_pre_header
      _
    $region3: #{tpu_custom_call.1} parent=1 // loop_header
      %s22 = sphi 0, %s26
      %p23 = scmp.ge.s32.totalorder %s22, 4
      %s32 = sphi 0, %s34
      %s35 = sphi 0, %s32
      %s36 = sphi 0, %s35
      %s52 = sphi 0, %s36
      %s56 = sphi 0, %s56
      %s58 = sphi 0, %s56
      %s59 = sphi 0, %s58
      %s73 = sphi 0, %s59
      %s77 = sphi 0, %s77
      %s79 = sphi 0, %s77
      %s80 = sphi 0, %s79
      %s94 = sphi 0, %s80
      %s98 = sphi 0, %s98
      %s100 = sphi 0, %s98
      %s101 = sphi 0, %s100
      %s115 = sphi 0, %s101
      %s119 = sphi 0, %s119
      %s121 = sphi 0, %s119
      %s122 = sphi 0, %s121
      %s136 = sphi 0, %s122
      %s140 = sphi 0, %s140
      %s142 = sphi 0, %s140
      %s143 = sphi 0, %s142
      %s157 = sphi 0, %s143
      %s161 = sphi 0, %s161
      %s163 = sphi 0, %s161
      %s164 = sphi 0, %s163
      %s178 = sphi 0, %s164
      %s182 = sphi 0, %s182
      %s184 = sphi 0, %s182
      %s185 = sphi 0, %s184
      %s199 = sphi 0, %s185
      %s203 = sphi 0, %s203
      %s205 = sphi 0, %s203
      %s206 = sphi 0, %s205
      %s220 = sphi 0, %s206
      %s224 = sphi 0, %s224
      %s226 = sphi 0, %s224
      %s227 = sphi 0, %s226
      %s241 = sphi 0, %s227
      %s245 = sphi 0, %s245
      %s247 = sphi 0, %s245
      %s248 = sphi 0, %s247
      %s262 = sphi 0, %s248
      %s266 = sphi 0, %s266
      %s268 = sphi 0, %s266
      %s269 = sphi 0, %s268
      %s283 = sphi 0, %s269
      %s287 = sphi 0, %s287
      %s289 = sphi 0, %s287
      %s290 = sphi 0, %s289
      %s304 = sphi 0, %s290
      %s310 = sphi 0, %s312
      %s313 = sphi 0, %s310
      %s314 = sphi 0, %s313
      %s330 = sphi 0, %s314
    $region4: #{tpu_custom_call.1} parent=1 // loop_header_branch
      %25 = sbr.rel (%p23) target = $region8
    $region5: #{tpu_custom_call.1} parent=1 // loop_body
      %s27 = ssub.s32 %s22, 1
      %s28 = ssub.s32 %s22, 2
      %s29 = sadd.s32 %s22, 1
      %s30 = ssub.s32 %s22, %s29
      %p31 = scmp.eq.s32.totalorder %s30, 0
      %s33 = sadd.s32 %s32, 1
      %s34 = scalar_select %p31, %s32, %s33
      %p37 = pneg %p31
      %p38 = scmp.eq.s32.totalorder %s22, 1
      %p39 = por %p37, %p38
      %p40 = scmp.ne.s32.totalorder %s32, %s35
      %p41 = scmp.eq.s32.totalorder %s22, 0
      %p42 = por %p40, %p41
      %p43 = scmp.ne.s32.totalorder %s32, %s35
      %p44 = scmp.eq.s32.totalorder %s27, 1
      %p45 = por %p43, %p44
      %p46 = scmp.ne.s32.totalorder %s35, %s36
      %p47 = scmp.eq.s32.totalorder %s27, 0
      %p48 = por %p46, %p47
      %p49 = scmp.ne.s32.totalorder %s35, %s36
      %p50 = scmp.eq.s32.totalorder %s28, 1
      %p51 = por %p49, %p50
      %p53 = scmp.ne.s32.totalorder %s36, %s52
      %p54 = scmp.eq.s32.totalorder %s28, 0
      %p55 = por %p53, %p54
      %s57 = sadd.s32 %s56, 1
      %p60 = scmp.eq.s32.totalorder %s22, 1
      %p61 = scmp.ne.s32.totalorder %s56, %s58
      %p62 = scmp.eq.s32.totalorder %s22, 0
      %p63 = por %p61, %p62
      %p64 = scmp.ne.s32.totalorder %s56, %s58
      %p65 = scmp.eq.s32.totalorder %s27, 1
      %p66 = por %p64, %p65
      %p67 = scmp.ne.s32.totalorder %s58, %s59
      %p68 = scmp.eq.s32.totalorder %s27, 0
      %p69 = por %p67, %p68
      %p70 = scmp.ne.s32.totalorder %s58, %s59
      %p71 = scmp.eq.s32.totalorder %s28, 1
      %p72 = por %p70, %p71
      %p74 = scmp.ne.s32.totalorder %s59, %s73
      %p75 = scmp.eq.s32.totalorder %s28, 0
      %p76 = por %p74, %p75
      %s78 = sadd.s32 %s77, 1
      %p81 = scmp.eq.s32.totalorder %s22, 1
      %p82 = scmp.ne.s32.totalorder %s77, %s79
      %p83 = scmp.eq.s32.totalorder %s22, 0
      %p84 = por %p82, %p83
      %p85 = scmp.ne.s32.totalorder %s77, %s79
      %p86 = scmp.eq.s32.totalorder %s27, 1
      %p87 = por %p85, %p86
      %p88 = scmp.ne.s32.totalorder %s79, %s80
      %p89 = scmp.eq.s32.totalorder %s27, 0
      %p90 = por %p88, %p89
      %p91 = scmp.ne.s32.totalorder %s79, %s80
      %p92 = scmp.eq.s32.totalorder %s28, 1
      %p93 = por %p91, %p92
      %p95 = scmp.ne.s32.totalorder %s80, %s94
      %p96 = scmp.eq.s32.totalorder %s28, 0
      %p97 = por %p95, %p96
      %s99 = sadd.s32 %s98, 1
      %p102 = scmp.eq.s32.totalorder %s22, 1
      %p103 = scmp.ne.s32.totalorder %s98, %s100
      %p104 = scmp.eq.s32.totalorder %s22, 0
      %p105 = por %p103, %p104
      %p106 = scmp.ne.s32.totalorder %s98, %s100
      %p107 = scmp.eq.s32.totalorder %s27, 1
      %p108 = por %p106, %p107
      %p109 = scmp.ne.s32.totalorder %s100, %s101
      %p110 = scmp.eq.s32.totalorder %s27, 0
      %p111 = por %p109, %p110
      %p112 = scmp.ne.s32.totalorder %s100, %s101
      %p113 = scmp.eq.s32.totalorder %s28, 1
      %p114 = por %p112, %p113
      %p116 = scmp.ne.s32.totalorder %s101, %s115
      %p117 = scmp.eq.s32.totalorder %s28, 0
      %p118 = por %p116, %p117
      %s120 = sadd.s32 %s119, 1
      %p123 = scmp.eq.s32.totalorder %s22, 1
      %p124 = scmp.ne.s32.totalorder %s119, %s121
      %p125 = scmp.eq.s32.totalorder %s22, 0
      %p126 = por %p124, %p125
      %p127 = scmp.ne.s32.totalorder %s119, %s121
      %p128 = scmp.eq.s32.totalorder %s27, 1
      %p129 = por %p127, %p128
      %p130 = scmp.ne.s32.totalorder %s121, %s122
      %p131 = scmp.eq.s32.totalorder %s27, 0
      %p132 = por %p130, %p131
      %p133 = scmp.ne.s32.totalorder %s121, %s122
      %p134 = scmp.eq.s32.totalorder %s28, 1
      %p135 = por %p133, %p134
      %p137 = scmp.ne.s32.totalorder %s122, %s136
      %p138 = scmp.eq.s32.totalorder %s28, 0
      %p139 = por %p137, %p138
      %s141 = sadd.s32 %s140, 1
      %p144 = scmp.eq.s32.totalorder %s22, 1
      %p145 = scmp.ne.s32.totalorder %s140, %s142
      %p146 = scmp.eq.s32.totalorder %s22, 0
      %p147 = por %p145, %p146
      %p148 = scmp.ne.s32.totalorder %s140, %s142
      %p149 = scmp.eq.s32.totalorder %s27, 1
      %p150 = por %p148, %p149
      %p151 = scmp.ne.s32.totalorder %s142, %s143
      %p152 = scmp.eq.s32.totalorder %s27, 0
      %p153 = por %p151, %p152
      %p154 = scmp.ne.s32.totalorder %s142, %s143
      %p155 = scmp.eq.s32.totalorder %s28, 1
      %p156 = por %p154, %p155
      %p158 = scmp.ne.s32.totalorder %s143, %s157
      %p159 = scmp.eq.s32.totalorder %s28, 0
      %p160 = por %p158, %p159
      %s162 = sadd.s32 %s161, 1
      %p165 = scmp.eq.s32.totalorder %s22, 1
      %p166 = scmp.ne.s32.totalorder %s161, %s163
      %p167 = scmp.eq.s32.totalorder %s22, 0
      %p168 = por %p166, %p167
      %p169 = scmp.ne.s32.totalorder %s161, %s163
      %p170 = scmp.eq.s32.totalorder %s27, 1
      %p171 = por %p169, %p170
      %p172 = scmp.ne.s32.totalorder %s163, %s164
      %p173 = scmp.eq.s32.totalorder %s27, 0
      %p174 = por %p172, %p173
      %p175 = scmp.ne.s32.totalorder %s163, %s164
      %p176 = scmp.eq.s32.totalorder %s28, 1
      %p177 = por %p175, %p176
      %p179 = scmp.ne.s32.totalorder %s164, %s178
      %p180 = scmp.eq.s32.totalorder %s28, 0
      %p181 = por %p179, %p180
      %s183 = sadd.s32 %s182, 1
      %p186 = scmp.eq.s32.totalorder %s22, 1
      %p187 = scmp.ne.s32.totalorder %s182, %s184
      %p188 = scmp.eq.s32.totalorder %s22, 0
      %p189 = por %p187, %p188
      %p190 = scmp.ne.s32.totalorder %s182, %s184
      %p191 = scmp.eq.s32.totalorder %s27, 1
      %p192 = por %p190, %p191
      %p193 = scmp.ne.s32.totalorder %s184, %s185
      %p194 = scmp.eq.s32.totalorder %s27, 0
      %p195 = por %p193, %p194
      %p196 = scmp.ne.s32.totalorder %s184, %s185
      %p197 = scmp.eq.s32.totalorder %s28, 1
      %p198 = por %p196, %p197
      %p200 = scmp.ne.s32.totalorder %s185, %s199
      %p201 = scmp.eq.s32.totalorder %s28, 0
      %p202 = por %p200, %p201
      %s204 = sadd.s32 %s203, 1
      %p207 = scmp.eq.s32.totalorder %s22, 1
      %p208 = scmp.ne.s32.totalorder %s203, %s205
      %p209 = scmp.eq.s32.totalorder %s22, 0
      %p210 = por %p208, %p209
      %p211 = scmp.ne.s32.totalorder %s203, %s205
      %p212 = scmp.eq.s32.totalorder %s27, 1
      %p213 = por %p211, %p212
      %p214 = scmp.ne.s32.totalorder %s205, %s206
      %p215 = scmp.eq.s32.totalorder %s27, 0
      %p216 = por %p214, %p215
      %p217 = scmp.ne.s32.totalorder %s205, %s206
      %p218 = scmp.eq.s32.totalorder %s28, 1
      %p219 = por %p217, %p218
      %p221 = scmp.ne.s32.totalorder %s206, %s220
      %p222 = scmp.eq.s32.totalorder %s28, 0
      %p223 = por %p221, %p222
      %s225 = sadd.s32 %s224, 1
      %p228 = scmp.eq.s32.totalorder %s22, 1
      %p229 = scmp.ne.s32.totalorder %s224, %s226
      %p230 = scmp.eq.s32.totalorder %s22, 0
      %p231 = por %p229, %p230
      %p232 = scmp.ne.s32.totalorder %s224, %s226
      %p233 = scmp.eq.s32.totalorder %s27, 1
      %p234 = por %p232, %p233
      %p235 = scmp.ne.s32.totalorder %s226, %s227
      %p236 = scmp.eq.s32.totalorder %s27, 0
      %p237 = por %p235, %p236
      %p238 = scmp.ne.s32.totalorder %s226, %s227
      %p239 = scmp.eq.s32.totalorder %s28, 1
      %p240 = por %p238, %p239
      %p242 = scmp.ne.s32.totalorder %s227, %s241
      %p243 = scmp.eq.s32.totalorder %s28, 0
      %p244 = por %p242, %p243
      %s246 = sadd.s32 %s245, 1
      %p249 = scmp.eq.s32.totalorder %s22, 1
      %p250 = scmp.ne.s32.totalorder %s245, %s247
      %p251 = scmp.eq.s32.totalorder %s22, 0
      %p252 = por %p250, %p251
      %p253 = scmp.ne.s32.totalorder %s245, %s247
      %p254 = scmp.eq.s32.totalorder %s27, 1
      %p255 = por %p253, %p254
      %p256 = scmp.ne.s32.totalorder %s247, %s248
      %p257 = scmp.eq.s32.totalorder %s27, 0
      %p258 = por %p256, %p257
      %p259 = scmp.ne.s32.totalorder %s247, %s248
      %p260 = scmp.eq.s32.totalorder %s28, 1
      %p261 = por %p259, %p260
      %p263 = scmp.ne.s32.totalorder %s248, %s262
      %p264 = scmp.eq.s32.totalorder %s28, 0
      %p265 = por %p263, %p264
      %s267 = sadd.s32 %s266, 1
      %p270 = scmp.eq.s32.totalorder %s22, 1
      %p271 = scmp.ne.s32.totalorder %s266, %s268
      %p272 = scmp.eq.s32.totalorder %s22, 0
      %p273 = por %p271, %p272
      %p274 = scmp.ne.s32.totalorder %s266, %s268
      %p275 = scmp.eq.s32.totalorder %s27, 1
      %p276 = por %p274, %p275
      %p277 = scmp.ne.s32.totalorder %s268, %s269
      %p278 = scmp.eq.s32.totalorder %s27, 0
      %p279 = por %p277, %p278
      %p280 = scmp.ne.s32.totalorder %s268, %s269
      %p281 = scmp.eq.s32.totalorder %s28, 1
      %p282 = por %p280, %p281
      %p284 = scmp.ne.s32.totalorder %s269, %s283
      %p285 = scmp.eq.s32.totalorder %s28, 0
      %p286 = por %p284, %p285
      %s288 = sadd.s32 %s287, 1
      %p291 = scmp.eq.s32.totalorder %s22, 1
      %p292 = scmp.ne.s32.totalorder %s287, %s289
      %p293 = scmp.eq.s32.totalorder %s22, 0
      %p294 = por %p292, %p293
      %p295 = scmp.ne.s32.totalorder %s287, %s289
      %p296 = scmp.eq.s32.totalorder %s27, 1
      %p297 = por %p295, %p296
      %p298 = scmp.ne.s32.totalorder %s289, %s290
      %p299 = scmp.eq.s32.totalorder %s27, 0
      %p300 = por %p298, %p299
      %p301 = scmp.ne.s32.totalorder %s289, %s290
      %p302 = scmp.eq.s32.totalorder %s28, 1
      %p303 = por %p301, %p302
      %p305 = scmp.ne.s32.totalorder %s290, %s304
      %p306 = scmp.eq.s32.totalorder %s28, 0
      %p307 = por %p305, %p306
      %s308 = ssub.s32 %s22, %s29
      %p309 = scmp.eq.s32.totalorder %s308, 0
      %s311 = sadd.s32 %s310, 1
      %s312 = scalar_select %p309, %s310, %s311
      %p315 = pneg %p309
      %p316 = scmp.eq.s32.totalorder %s22, 1
      %p317 = por %p315, %p316
      %p318 = scmp.ne.s32.totalorder %s310, %s313
      %p319 = scmp.eq.s32.totalorder %s22, 0
      %p320 = por %p318, %p319
      %p321 = scmp.ne.s32.totalorder %s310, %s313
      %p322 = scmp.eq.s32.totalorder %s27, 1
      %p323 = por %p321, %p322
      %p324 = scmp.ne.s32.totalorder %s313, %s314
      %p325 = scmp.eq.s32.totalorder %s27, 0
      %p326 = por %p324, %p325
      %p327 = scmp.ne.s32.totalorder %s313, %s314
      %p328 = scmp.eq.s32.totalorder %s28, 1
      %p329 = por %p327, %p328
      %p331 = scmp.ne.s32.totalorder %s314, %s330
      %p332 = scmp.eq.s32.totalorder %s28, 0
      %p333 = por %p331, %p332
      %p334 = scmp.le.s32.totalorder 1, %s22
      %p335 = scmp.lt.s32.totalorder %s22, 3
      %p336 = pnand %p334, %p335
      %p337 = pneg %p336
      // Predicated region
      $region9: #{tpu_custom_call.1} parent=5 // pred_check
        _
      $region10: #{tpu_custom_call.1} parent=5 // pred_check_branch
        %339 = sbr.rel (%p336) target = $region12
      $region11: #{tpu_custom_call.1} parent=5 // pred_region
        %s340 = ssub.s32 %s22, 1
        // Predicated region
        $region13: #{tpu_custom_call.1} parent=11 // pred_check
          %p341 = pneg %p69
        $region14: #{tpu_custom_call.1} parent=11 // pred_check_branch
          %343 = sbr.rel (%p341) target = $region16
        $region15: #{tpu_custom_call.1} parent=11 // pred_region
          _
        $region16: #{tpu_custom_call.1} parent=11 // pred_fallthru
          _
        // Predicated region
        $region17: #{tpu_custom_call.1} parent=11 // pred_check
          %p344 = pneg %p90
        $region18: #{tpu_custom_call.1} parent=11 // pred_check_branch
          %346 = sbr.rel (%p344) target = $region20
        $region19: #{tpu_custom_call.1} parent=11 // pred_region
          _
        $region20: #{tpu_custom_call.1} parent=11 // pred_fallthru
          _
        // Predicated region
        $region21: #{tpu_custom_call.1} parent=11 // pred_check
          %p347 = pneg %p111
        $region22: #{tpu_custom_call.1} parent=11 // pred_check_branch
          %349 = sbr.rel (%p347) target = $region24
        $region23: #{tpu_custom_call.1} parent=11 // pred_region
          _
        $region24: #{tpu_custom_call.1} parent=11 // pred_fallthru
          _
        // Predicated region
        $region25: #{tpu_custom_call.1} parent=11 // pred_check
          %p350 = pneg %p132
        $region26: #{tpu_custom_call.1} parent=11 // pred_check_branch
          %352 = sbr.rel (%p350) target = $region28
        $region27: #{tpu_custom_call.1} parent=11 // pred_region
          _
        $region28: #{tpu_custom_call.1} parent=11 // pred_fallthru
          _
        // Predicated region
        $region29: #{tpu_custom_call.1} parent=11 // pred_check
          %p353 = pneg %p153
        $region30: #{tpu_custom_call.1} parent=11 // pred_check_branch
          %355 = sbr.rel (%p353) target = $region32
        $region31: #{tpu_custom_call.1} parent=11 // pred_region
          _
        $region32: #{tpu_custom_call.1} parent=11 // pred_fallthru
          _
        // Predicated region
        $region33: #{tpu_custom_call.1} parent=11 // pred_check
          %p356 = pneg %p174
        $region34: #{tpu_custom_call.1} parent=11 // pred_check_branch
          %358 = sbr.rel (%p356) target = $region36
        $region35: #{tpu_custom_call.1} parent=11 // pred_region
          _
        $region36: #{tpu_custom_call.1} parent=11 // pred_fallthru
          _
        // Predicated region
        $region37: #{tpu_custom_call.1} parent=11 // pred_check
          %p359 = pneg %p195
        $region38: #{tpu_custom_call.1} parent=11 // pred_check_branch
          %361 = sbr.rel (%p359) target = $region40
        $region39: #{tpu_custom_call.1} parent=11 // pred_region
          _
        $region40: #{tpu_custom_call.1} parent=11 // pred_fallthru
          _
        // Predicated region
        $region41: #{tpu_custom_call.1} parent=11 // pred_check
          %p362 = pneg %p216
        $region42: #{tpu_custom_call.1} parent=11 // pred_check_branch
          %364 = sbr.rel (%p362) target = $region44
        $region43: #{tpu_custom_call.1} parent=11 // pred_region
          _
        $region44: #{tpu_custom_call.1} parent=11 // pred_fallthru
          _
        // Predicated region
        $region45: #{tpu_custom_call.1} parent=11 // pred_check
          %p365 = pneg %p237
        $region46: #{tpu_custom_call.1} parent=11 // pred_check_branch
          %367 = sbr.rel (%p365) target = $region48
        $region47: #{tpu_custom_call.1} parent=11 // pred_region
          _
        $region48: #{tpu_custom_call.1} parent=11 // pred_fallthru
          _
        // Predicated region
        $region49: #{tpu_custom_call.1} parent=11 // pred_check
          %p368 = pneg %p258
        $region50: #{tpu_custom_call.1} parent=11 // pred_check_branch
          %370 = sbr.rel (%p368) target = $region52
        $region51: #{tpu_custom_call.1} parent=11 // pred_region
          _
        $region52: #{tpu_custom_call.1} parent=11 // pred_fallthru
          _
        // Predicated region
        $region53: #{tpu_custom_call.1} parent=11 // pred_check
          %p371 = pneg %p279
        $region54: #{tpu_custom_call.1} parent=11 // pred_check_branch
          %373 = sbr.rel (%p371) target = $region56
        $region55: #{tpu_custom_call.1} parent=11 // pred_region
          _
        $region56: #{tpu_custom_call.1} parent=11 // pred_fallthru
          _
        // Predicated region
        $region57: #{tpu_custom_call.1} parent=11 // pred_check
          %p374 = pneg %p300
        $region58: #{tpu_custom_call.1} parent=11 // pred_check_branch
          %376 = sbr.rel (%p374) target = $region60
        $region59: #{tpu_custom_call.1} parent=11 // pred_region
          _
        $region60: #{tpu_custom_call.1} parent=11 // pred_fallthru
          _
      $region12: #{tpu_custom_call.1} parent=5 // pred_fallthru
        _
      %p377 = scmp.lt.s32.totalorder %s22, 2
      // Predicated region
      $region61: #{tpu_custom_call.1} parent=5 // pred_check
        %p378 = pneg %p377
      $region62: #{tpu_custom_call.1} parent=5 // pred_check_branch
        %380 = sbr.rel (%p378) target = $region64
      $region63: #{tpu_custom_call.1} parent=5 // pred_region
        // Predicated region
        $region65: #{tpu_custom_call.1} parent=63 // pred_check
          %p381 = pneg %p42
        $region66: #{tpu_custom_call.1} parent=63 // pred_check_branch
          %383 = sbr.rel (%p381) target = $region68
        $region67: #{tpu_custom_call.1} parent=63 // pred_region
          %p384 = scmp.lt.s32.totalorder %s22, 1
          %s385 = scalar_select %p384, %s22, 1
          %s386 = smul.addr %s385, 8
          %s387 = scalar_lea.vmem %s0, %s386
        $region68: #{tpu_custom_call.1} parent=63 // pred_fallthru
          _
      $region64: #{tpu_custom_call.1} parent=5 // pred_fallthru
        _
      %p388 = scmp.le.s32.totalorder 1, %s22
      %p389 = scmp.lt.s32.totalorder %s22, 3
      %p390 = pnand %p388, %p389
      %p391 = pneg %p390
      // Predicated region
      $region69: #{tpu_custom_call.1} parent=5 // pred_check
        _
      $region70: #{tpu_custom_call.1} parent=5 // pred_check_branch
        %393 = sbr.rel (%p390) target = $region72
      $region71: #{tpu_custom_call.1} parent=5 // pred_region
        %s394 = ssub.s32 %s22, 1
        %p395 = scmp.lt.s32.totalorder %s27, 1
        %s396 = scalar_select %p395, %s27, 1
        %s397 = smul.addr %s396, 8
        %s398 = scalar_lea.vmem %s0, %s397
        %p399 = pneg %p48
        %p400 = pneg %p45
        %p401 = pneg %p69
        %p402 = pneg %p66
        %p403 = pneg %p90
        %p404 = pneg %p87
        %p405 = pneg %p111
        %p406 = pneg %p108
        %p407 = pneg %p132
        %p408 = pneg %p129
        %p409 = pneg %p153
        %p410 = pneg %p150
        %p411 = pneg %p174
        %p412 = pneg %p171
        %p413 = pneg %p195
        %p414 = pneg %p192
        %p415 = pneg %p216
        %p416 = pneg %p213
        %p417 = pneg %p237
        %p418 = pneg %p234
        %p419 = pneg %p258
        %p420 = pneg %p255
        %p421 = pneg %p279
        %p422 = pneg %p276
        %p423 = pneg %p300
        %p424 = pneg %p297
        %p425 = pneg %p326
        %p426 = pneg %p323
        %s427 = sand.u32 %s313, 1
        %s428 = scalar_lea.sflag [#allocation3], %s427
        %s429 = sand.u32 %s313, 1
        %s430 = smul.addr %s429, 8
        %s431 = scalar_lea.vmem [#allocation2], %s430
        %p432 = scmp.lt.s32.totalorder %s27, 1
        %s433 = scalar_select %p432, %s27, 1
        %s434 = smul.addr %s433, 8
        %s435 = scalar_lea.vmem %s0, %s434
        %v437 = vld [vmem:[%s435] sm:$0xff]
        %v438 = vld [vmem:[%s1] sm:$0x1]
        %v439 = vld [vmem:[%s2] sm:$0x1]
        %vm440 = vcmask 261120
        %v441 = vsel %vm440, %v437, 0.0
        %442 = vadd.xlane.f32.xlu0 %v441
        %v443 = vpop.xlane.xlu0 %442
        %v444 = vrcp.pop 32.0
        %v445 = vmul.f32 %v443, %v444
        %v446 = vsub.f32 %v437, %v445
        %v447 = vmul.f32 %v446, %v446
        %v448 = vsel %vm440, %v447, 0.0
        %449 = vadd.xlane.f32.xlu0 %v448
        %v450 = vpop.xlane.xlu0 %449
        %v451 = vmul.f32 %v450, %v444
        %v452 = vadd.f32 %v451, 1e-05
        %v453 = vrsqrt.pop %v452
        %v454 = vmul.f32 %v446, %v453
        %v456 = vlaneseq
        %v457 = vshrl.u32 %v456, 7
        %v458 = vsub.s32 0, %v457
        %v459 = vrot.slane %v438, %v458
        %v461 = vmul.f32 %v454, %v459
        %v463 = vlaneseq
        %v464 = vshrl.u32 %v463, 7
        %v465 = vsub.s32 0, %v464
        %v466 = vrot.slane %v439, %v465
        %v468 = vadd.f32 %v461, %v466
        %v469 = vpack.c.bf16 %v468, %v468
        %v470 = vld [vmem:[%s3] sm:$0xf]
        %v471 = vld [vmem:[%s3 + $0x4] sm:$0xf]
        %v472 = vld [vmem:[%s3 + $0x8] sm:$0xf]
        %v473 = vld [vmem:[%s3 + $0xc] sm:$0xf]
        %v474 = vld [vmem:[%s4] sm:$0x1]
        %v476 = vlaneseq
        %v477 = vshrl.u32 %v476, 7
        %v478 = vsub.s32 0, %v477
        %v479 = vrot.slane %v474, %v478
        %v485 = vunpack.c.l.b16 %v470
        %v486 = vunpack.c.l.b16 %v471
        %v487 = vunpack.c.l.b16 %v472
        %v488 = vunpack.c.l.b16 %v473
        %v489 = vpack.c.b16 %v486, %v485
        %v490 = vpack.c.b16 %v488, %v487
        %v494 = vsel %vm440, %v469, 0
        %496 = vmatprep.subr.bf16.mxu0 0
        %497 = vmatpush1.bf16.msra.mxu0 0
        %498 = vmatprep.subr.bf16.mxu0 0
        %499 = vmatpush1.bf16.msra.mxu0 0
        %500 = vmatprep.subr.bf16.mxu0 0
        %501 = vmatpush1.bf16.msra.mxu0 0
        %502 = vmatprep.subr.bf16.mxu0 0
        %503 = vmatpush1.bf16.msra.mxu0 0
        %504 = vmatprep.subr.bf16.mxu0 0
        %505 = vmatpush1.bf16.msra.mxu0 0
        %506 = vmatprep.subr.bf16.mxu0 0
        %507 = vmatpush1.bf16.msra.mxu0 0
        %508 = vmatprep.subr.bf16.mxu0 0
        %509 = vmatpush1.bf16.msra.mxu0 %v490
        %510 = vmatprep.subr.bf16.mxu0 0
        %511 = vmatpush1.bf16.msra.mxu0 %v489
        %512 = vmatprep.subr.bf16.mxu0 0
        %513 = vmatpush2.bf16.msra.mxu0 0
        %514 = vmatprep.subr.bf16.mxu0 0
        %515 = vmatpush2.bf16.msra.mxu0 0
        %516 = vmatprep.subr.bf16.mxu0 0
        %517 = vmatpush2.bf16.msra.mxu0 0
        %518 = vmatprep.subr.bf16.mxu0 0
        %519 = vmatpush2.bf16.msra.mxu0 0
        %520 = vmatprep.subr.bf16.mxu0 0
        %521 = vmatpush2.bf16.msra.mxu0 0
        %522 = vmatprep.subr.bf16.mxu0 0
        %523 = vmatpush2.bf16.msra.mxu0 0
        %524 = vmatprep.subr.bf16.mxu0 0
        %525 = vmatpush2.bf16.msra.mxu0 0
        %526 = vmatprep.subr.bf16.mxu0 0
        %527 = vmatpush2.bf16.msra.mxu0 0
        %528 = vmatprep.mubr.bf16.mxu0 0
        %529 = vmatmul.mubr.bf16.gmra.mxu0 %v494
        %v530 = vpop.f32.mrf.mxu0
        %v531 = vadd.f32 %v479, %v530
        %v532 = vpop.f32.mrf.mxu0
        %v533 = vpop.f32.mrf.mxu0
        %v534 = vpop.f32.mrf.mxu0
        %535 = vdwg.mxu0
        %v536 = vpack.c.bf16 %v531, %v531
        %538 = vrot.lane.b32.xlu0 %v536, 96
        %v539 = vpop.permute.xlu0 %538
        %vm540 = vcmask 64512
        %v542 = vsel %vm540, %v536, 0
        %v545 = vsel %vm540, %v539, 0
        %547 = vmatprep.subr.bf16.mxu0 0
        %548 = vmatpush1.bf16.xpose.msra.mxu0 0
        %549 = vmatprep.subr.bf16.mxu0 0
        %550 = vmatpush1.bf16.xpose.msra.mxu0 0
        %551 = vmatprep.subr.bf16.mxu0 0
        %552 = vmatpush1.bf16.xpose.msra.mxu0 0
        %553 = vmatprep.subr.bf16.mxu0 0
        %554 = vmatpush1.bf16.xpose.msra.mxu0 0
        %555 = vmatprep.subr.bf16.mxu0 0
        %556 = vmatpush1.bf16.xpose.msra.mxu0 0
        %557 = vmatprep.subr.bf16.mxu0 0
        %558 = vmatpush1.bf16.xpose.msra.mxu0 0
        %559 = vmatprep.subr.bf16.mxu0 0
        %560 = vmatpush1.bf16.xpose.msra.mxu0 0
        %561 = vmatprep.subr.bf16.mxu0 0
        %562 = vmatpush1.bf16.xpose.msra.mxu0 %v545
        %563 = vmatprep.subr.bf16.mxu0 0
        %564 = vmatpush2.bf16.xpose.msra.mxu0 0
        %565 = vmatprep.subr.bf16.mxu0 0
        %566 = vmatpush2.bf16.xpose.msra.mxu0 0
        %567 = vmatprep.subr.bf16.mxu0 0
        %568 = vmatpush2.bf16.xpose.msra.mxu0 0
        %569 = vmatprep.subr.bf16.mxu0 0
        %570 = vmatpush2.bf16.xpose.msra.mxu0 0
        %571 = vmatprep.subr.bf16.mxu0 0
        %572 = vmatpush2.bf16.xpose.msra.mxu0 0
        %573 = vmatprep.subr.bf16.mxu0 0
        %574 = vmatpush2.bf16.xpose.msra.mxu0 0
        %575 = vmatprep.subr.bf16.mxu0 0
        %576 = vmatpush2.bf16.xpose.msra.mxu0 0
        %577 = vmatprep.subr.bf16.mxu0 0
        %578 = vmatpush2.bf16.xpose.msra.mxu0 0
        %579 = vmatprep.mubr.bf16.mxu0 0
        %580 = vmatmul.mubr.bf16.gmra.mxu0 %v542
        %v581 = vpop.f32.mrf.mxu0
        %v582 = vadd.f32 0.0, %v581
        %v583 = vpop.f32.mrf.mxu0
        %v584 = vpop.f32.mrf.mxu0
        %v585 = vpop.f32.mrf.mxu0
        %586 = vdwg.mxu0
        %v587 = vsel %vm540, %v582, -inf
        %588 = vmax.xlane.f32.xlu0 %v587
        %v589 = vpop.xlane.xlu0 %588
        %v590 = vsub.f32 %v582, %v589
        %v591 = vmul.f32 %v590, 1.442695
        %v592 = vpow.pop %v591
        %v593 = vsel %vm540, %v592, 0.0
        %594 = vadd.xlane.f32.xlu0 %v593
        %v595 = vpop.xlane.xlu0 %594
        %v596 = vmul.f32 %v595, 5.656854
        %v597 = vrcp.pop %v596
        %v598 = vmul.f32 %v592, %v597
        %v599 = vpack.c.bf16 %v598, %v598
        %600 = vrot.lane.b32.xlu0 %v536, 64
        %v601 = vpop.permute.xlu0 %600
        %v603 = vsel %vm540, %v599, 0
        %vm605 = vcmask 1043456
        %v607 = vsel %vm605, %v601, 0
        %609 = vmatprep.subr.bf16.mxu0 0
        %610 = vmatpush1.bf16.msra.mxu0 0
        %611 = vmatprep.subr.bf16.mxu0 0
        %612 = vmatpush1.bf16.msra.mxu0 0
        %613 = vmatprep.subr.bf16.mxu0 0
        %614 = vmatpush1.bf16.msra.mxu0 0
        %615 = vmatprep.subr.bf16.mxu0 0
        %616 = vmatpush1.bf16.msra.mxu0 0
        %617 = vmatprep.subr.bf16.mxu0 0
        %618 = vmatpush1.bf16.msra.mxu0 0
        %619 = vmatprep.subr.bf16.mxu0 0
        %620 = vmatpush1.bf16.msra.mxu0 0
        %621 = vmatprep.subr.bf16.mxu0 0
        %622 = vmatpush1.bf16.msra.mxu0 0
        %623 = vmatprep.subr.bf16.mxu0 0
        %624 = vmatpush1.bf16.msra.mxu0 %v607
        %625 = vmatprep.subr.bf16.mxu0 0
        %626 = vmatpush2.bf16.msra.mxu0 0
        %627 = vmatprep.subr.bf16.mxu0 0
        %628 = vmatpush2.bf16.msra.mxu0 0
        %629 = vmatprep.subr.bf16.mxu0 0
        %630 = vmatpush2.bf16.msra.mxu0 0
        %631 = vmatprep.subr.bf16.mxu0 0
        %632 = vmatpush2.bf16.msra.mxu0 0
        %633 = vmatprep.subr.bf16.mxu0 0
        %634 = vmatpush2.bf16.msra.mxu0 0
        %635 = vmatprep.subr.bf16.mxu0 0
        %636 = vmatpush2.bf16.msra.mxu0 0
        %637 = vmatprep.subr.bf16.mxu0 0
        %638 = vmatpush2.bf16.msra.mxu0 0
        %639 = vmatprep.subr.bf16.mxu0 0
        %640 = vmatpush2.bf16.msra.mxu0 0
        %641 = vmatprep.mubr.bf16.mxu0 0
        %642 = vmatmul.mubr.bf16.gmra.mxu0 %v603
        %v643 = vpop.f32.mrf.mxu0
        %v644 = vadd.f32 0.0, %v643
        %v645 = vpop.f32.mrf.mxu0
        %v646 = vpop.f32.mrf.mxu0
        %v647 = vpop.f32.mrf.mxu0
        %648 = vdwg.mxu0
        %v649 = vpack.c.bf16 %v644, %v644
        %650 = vrot.lane.b32.xlu0 %v536, 120
        %v651 = vpop.permute.xlu0 %650
        %652 = vrot.lane.b32.xlu0 %v536, 88
        %v653 = vpop.permute.xlu0 %652
        %v655 = vsel %vm540, %v651, 0
        %v658 = vsel %vm540, %v653, 0
        %660 = vmatprep.subr.bf16.mxu0 0
        %661 = vmatpush1.bf16.xpose.msra.mxu0 0
        %662 = vmatprep.subr.bf16.mxu0 0
        %663 = vmatpush1.bf16.xpose.msra.mxu0 0
        %664 = vmatprep.subr.bf16.mxu0 0
        %665 = vmatpush1.bf16.xpose.msra.mxu0 0
        %666 = vmatprep.subr.bf16.mxu0 0
        %667 = vmatpush1.bf16.xpose.msra.mxu0 0
        %668 = vmatprep.subr.bf16.mxu0 0
        %669 = vmatpush1.bf16.xpose.msra.mxu0 0
        %670 = vmatprep.subr.bf16.mxu0 0
        %671 = vmatpush1.bf16.xpose.msra.mxu0 0
        %672 = vmatprep.subr.bf16.mxu0 0
        %673 = vmatpush1.bf16.xpose.msra.mxu0 0
        %674 = vmatprep.subr.bf16.mxu0 0
        %675 = vmatpush1.bf16.xpose.msra.mxu0 %v658
        %676 = vmatprep.subr.bf16.mxu0 0
        %677 = vmatpush2.bf16.xpose.msra.mxu0 0
        %678 = vmatprep.subr.bf16.mxu0 0
        %679 = vmatpush2.bf16.xpose.msra.mxu0 0
        %680 = vmatprep.subr.bf16.mxu0 0
        %681 = vmatpush2.bf16.xpose.msra.mxu0 0
        %682 = vmatprep.subr.bf16.mxu0 0
        %683 = vmatpush2.bf16.xpose.msra.mxu0 0
        %684 = vmatprep.subr.bf16.mxu0 0
        %685 = vmatpush2.bf16.xpose.msra.mxu0 0
        %686 = vmatprep.subr.bf16.mxu0 0
        %687 = vmatpush2.bf16.xpose.msra.mxu0 0
        %688 = vmatprep.subr.bf16.mxu0 0
        %689 = vmatpush2.bf16.xpose.msra.mxu0 0
        %690 = vmatprep.subr.bf16.mxu0 0
        %691 = vmatpush2.bf16.xpose.msra.mxu0 0
        %692 = vmatprep.mubr.bf16.mxu0 0
        %693 = vmatmul.mubr.bf16.gmra.mxu0 %v655
        %v694 = vpop.f32.mrf.mxu0
        %v695 = vadd.f32 0.0, %v694
        %v696 = vpop.f32.mrf.mxu0
        %v697 = vpop.f32.mrf.mxu0
        %v698 = vpop.f32.mrf.mxu0
        %699 = vdwg.mxu0
        %v700 = vsel %vm540, %v695, -inf
        %701 = vmax.xlane.f32.xlu0 %v700
        %v702 = vpop.xlane.xlu0 %701
        %v703 = vsub.f32 %v695, %v702
        %v704 = vmul.f32 %v703, 1.442695
        %v705 = vpow.pop %v704
        %v706 = vsel %vm540, %v705, 0.0
        %707 = vadd.xlane.f32.xlu0 %v706
        %v708 = vpop.xlane.xlu0 %707
        %v709 = vmul.f32 %v708, 5.656854
        %v710 = vrcp.pop %v709
        %v711 = vmul.f32 %v705, %v710
        %v712 = vpack.c.bf16 %v711, %v711
        %713 = vrot.lane.b32.xlu0 %v536, 56
        %v714 = vpop.permute.xlu0 %713
        %v716 = vsel %vm540, %v712, 0
        %v719 = vsel %vm605, %v714, 0
        %721 = vmatprep.subr.bf16.mxu0 0
        %722 = vmatpush1.bf16.msra.mxu0 0
        %723 = vmatprep.subr.bf16.mxu0 0
        %724 = vmatpush1.bf16.msra.mxu0 0
        %725 = vmatprep.subr.bf16.mxu0 0
        %726 = vmatpush1.bf16.msra.mxu0 0
        %727 = vmatprep.subr.bf16.mxu0 0
        %728 = vmatpush1.bf16.msra.mxu0 0
        %729 = vmatprep.subr.bf16.mxu0 0
        %730 = vmatpush1.bf16.msra.mxu0 0
        %731 = vmatprep.subr.bf16.mxu0 0
        %732 = vmatpush1.bf16.msra.mxu0 0
        %733 = vmatprep.subr.bf16.mxu0 0
        %734 = vmatpush1.bf16.msra.mxu0 0
        %735 = vmatprep.subr.bf16.mxu0 0
        %736 = vmatpush1.bf16.msra.mxu0 %v719
        %737 = vmatprep.subr.bf16.mxu0 0
        %738 = vmatpush2.bf16.msra.mxu0 0
        %739 = vmatprep.subr.bf16.mxu0 0
        %740 = vmatpush2.bf16.msra.mxu0 0
        %741 = vmatprep.subr.bf16.mxu0 0
        %742 = vmatpush2.bf16.msra.mxu0 0
        %743 = vmatprep.subr.bf16.mxu0 0
        %744 = vmatpush2.bf16.msra.mxu0 0
        %745 = vmatprep.subr.bf16.mxu0 0
        %746 = vmatpush2.bf16.msra.mxu0 0
        %747 = vmatprep.subr.bf16.mxu0 0
        %748 = vmatpush2.bf16.msra.mxu0 0
        %749 = vmatprep.subr.bf16.mxu0 0
        %750 = vmatpush2.bf16.msra.mxu0 0
        %751 = vmatprep.subr.bf16.mxu0 0
        %752 = vmatpush2.bf16.msra.mxu0 0
        %753 = vmatprep.mubr.bf16.mxu0 0
        %754 = vmatmul.mubr.bf16.gmra.mxu0 %v716
        %v755 = vpop.f32.mrf.mxu0
        %v756 = vadd.f32 0.0, %v755
        %v757 = vpop.f32.mrf.mxu0
        %v758 = vpop.f32.mrf.mxu0
        %v759 = vpop.f32.mrf.mxu0
        %760 = vdwg.mxu0
        %v761 = vpack.c.bf16 %v756, %v756
        %762 = vrot.lane.b32.xlu0 %v536, 112
        %v763 = vpop.permute.xlu0 %762
        %764 = vrot.lane.b32.xlu0 %v536, 80
        %v765 = vpop.permute.xlu0 %764
        %v767 = vsel %vm540, %v763, 0
        %v770 = vsel %vm540, %v765, 0
        %772 = vmatprep.subr.bf16.mxu0 0
        %773 = vmatpush1.bf16.xpose.msra.mxu0 0
        %774 = vmatprep.subr.bf16.mxu0 0
        %775 = vmatpush1.bf16.xpose.msra.mxu0 0
        %776 = vmatprep.subr.bf16.mxu0 0
        %777 = vmatpush1.bf16.xpose.msra.mxu0 0
        %778 = vmatprep.subr.bf16.mxu0 0
        %779 = vmatpush1.bf16.xpose.msra.mxu0 0
        %780 = vmatprep.subr.bf16.mxu0 0
        %781 = vmatpush1.bf16.xpose.msra.mxu0 0
        %782 = vmatprep.subr.bf16.mxu0 0
        %783 = vmatpush1.bf16.xpose.msra.mxu0 0
        %784 = vmatprep.subr.bf16.mxu0 0
        %785 = vmatpush1.bf16.xpose.msra.mxu0 0
        %786 = vmatprep.subr.bf16.mxu0 0
        %787 = vmatpush1.bf16.xpose.msra.mxu0 %v770
        %788 = vmatprep.subr.bf16.mxu0 0
        %789 = vmatpush2.bf16.xpose.msra.mxu0 0
        %790 = vmatprep.subr.bf16.mxu0 0
        %791 = vmatpush2.bf16.xpose.msra.mxu0 0
        %792 = vmatprep.subr.bf16.mxu0 0
        %793 = vmatpush2.bf16.xpose.msra.mxu0 0
        %794 = vmatprep.subr.bf16.mxu0 0
        %795 = vmatpush2.bf16.xpose.msra.mxu0 0
        %796 = vmatprep.subr.bf16.mxu0 0
        %797 = vmatpush2.bf16.xpose.msra.mxu0 0
        %798 = vmatprep.subr.bf16.mxu0 0
        %799 = vmatpush2.bf16.xpose.msra.mxu0 0
        %800 = vmatprep.subr.bf16.mxu0 0
        %801 = vmatpush2.bf16.xpose.msra.mxu0 0
        %802 = vmatprep.subr.bf16.mxu0 0
        %803 = vmatpush2.bf16.xpose.msra.mxu0 0
        %804 = vmatprep.mubr.bf16.mxu0 0
        %805 = vmatmul.mubr.bf16.gmra.mxu0 %v767
        %v806 = vpop.f32.mrf.mxu0
        %v807 = vadd.f32 0.0, %v806
        %v808 = vpop.f32.mrf.mxu0
        %v809 = vpop.f32.mrf.mxu0
        %v810 = vpop.f32.mrf.mxu0
        %811 = vdwg.mxu0
        %v812 = vsel %vm540, %v807, -inf
        %813 = vmax.xlane.f32.xlu0 %v812
        %v814 = vpop.xlane.xlu0 %813
        %v815 = vsub.f32 %v807, %v814
        %v816 = vmul.f32 %v815, 1.442695
        %v817 = vpow.pop %v816
        %v818 = vsel %vm540, %v817, 0.0
        %819 = vadd.xlane.f32.xlu0 %v818
        %v820 = vpop.xlane.xlu0 %819
        %v821 = vmul.f32 %v820, 5.656854
        %v822 = vrcp.pop %v821
        %v823 = vmul.f32 %v817, %v822
        %v824 = vpack.c.bf16 %v823, %v823
        %825 = vrot.lane.b32.xlu0 %v536, 48
        %v826 = vpop.permute.xlu0 %825
        %v828 = vsel %vm540, %v824, 0
        %v831 = vsel %vm605, %v826, 0
        %833 = vmatprep.subr.bf16.mxu0 0
        %834 = vmatpush1.bf16.msra.mxu0 0
        %835 = vmatprep.subr.bf16.mxu0 0
        %836 = vmatpush1.bf16.msra.mxu0 0
        %837 = vmatprep.subr.bf16.mxu0 0
        %838 = vmatpush1.bf16.msra.mxu0 0
        %839 = vmatprep.subr.bf16.mxu0 0
        %840 = vmatpush1.bf16.msra.mxu0 0
        %841 = vmatprep.subr.bf16.mxu0 0
        %842 = vmatpush1.bf16.msra.mxu0 0
        %843 = vmatprep.subr.bf16.mxu0 0
        %844 = vmatpush1.bf16.msra.mxu0 0
        %845 = vmatprep.subr.bf16.mxu0 0
        %846 = vmatpush1.bf16.msra.mxu0 0
        %847 = vmatprep.subr.bf16.mxu0 0
        %848 = vmatpush1.bf16.msra.mxu0 %v831
        %849 = vmatprep.subr.bf16.mxu0 0
        %850 = vmatpush2.bf16.msra.mxu0 0
        %851 = vmatprep.subr.bf16.mxu0 0
        %852 = vmatpush2.bf16.msra.mxu0 0
        %853 = vmatprep.subr.bf16.mxu0 0
        %854 = vmatpush2.bf16.msra.mxu0 0
        %855 = vmatprep.subr.bf16.mxu0 0
        %856 = vmatpush2.bf16.msra.mxu0 0
        %857 = vmatprep.subr.bf16.mxu0 0
        %858 = vmatpush2.bf16.msra.mxu0 0
        %859 = vmatprep.subr.bf16.mxu0 0
        %860 = vmatpush2.bf16.msra.mxu0 0
        %861 = vmatprep.subr.bf16.mxu0 0
        %862 = vmatpush2.bf16.msra.mxu0 0
        %863 = vmatprep.subr.bf16.mxu0 0
        %864 = vmatpush2.bf16.msra.mxu0 0
        %865 = vmatprep.mubr.bf16.mxu0 0
        %866 = vmatmul.mubr.bf16.gmra.mxu0 %v828
        %v867 = vpop.f32.mrf.mxu0
        %v868 = vadd.f32 0.0, %v867
        %v869 = vpop.f32.mrf.mxu0
        %v870 = vpop.f32.mrf.mxu0
        %v871 = vpop.f32.mrf.mxu0
        %872 = vdwg.mxu0
        %v873 = vpack.c.bf16 %v868, %v868
        %874 = vrot.lane.b32.xlu0 %v536, 104
        %v875 = vpop.permute.xlu0 %874
        %876 = vrot.lane.b32.xlu0 %v536, 72
        %v877 = vpop.permute.xlu0 %876
        %v879 = vsel %vm540, %v875, 0
        %v882 = vsel %vm540, %v877, 0
        %884 = vmatprep.subr.bf16.mxu0 0
        %885 = vmatpush1.bf16.xpose.msra.mxu0 0
        %886 = vmatprep.subr.bf16.mxu0 0
        %887 = vmatpush1.bf16.xpose.msra.mxu0 0
        %888 = vmatprep.subr.bf16.mxu0 0
        %889 = vmatpush1.bf16.xpose.msra.mxu0 0
        %890 = vmatprep.subr.bf16.mxu0 0
        %891 = vmatpush1.bf16.xpose.msra.mxu0 0
        %892 = vmatprep.subr.bf16.mxu0 0
        %893 = vmatpush1.bf16.xpose.msra.mxu0 0
        %894 = vmatprep.subr.bf16.mxu0 0
        %895 = vmatpush1.bf16.xpose.msra.mxu0 0
        %896 = vmatprep.subr.bf16.mxu0 0
        %897 = vmatpush1.bf16.xpose.msra.mxu0 0
        %898 = vmatprep.subr.bf16.mxu0 0
        %899 = vmatpush1.bf16.xpose.msra.mxu0 %v882
        %900 = vmatprep.subr.bf16.mxu0 0
        %901 = vmatpush2.bf16.xpose.msra.mxu0 0
        %902 = vmatprep.subr.bf16.mxu0 0
        %903 = vmatpush2.bf16.xpose.msra.mxu0 0
        %904 = vmatprep.subr.bf16.mxu0 0
        %905 = vmatpush2.bf16.xpose.msra.mxu0 0
        %906 = vmatprep.subr.bf16.mxu0 0
        %907 = vmatpush2.bf16.xpose.msra.mxu0 0
        %908 = vmatprep.subr.bf16.mxu0 0
        %909 = vmatpush2.bf16.xpose.msra.mxu0 0
        %910 = vmatprep.subr.bf16.mxu0 0
        %911 = vmatpush2.bf16.xpose.msra.mxu0 0
        %912 = vmatprep.subr.bf16.mxu0 0
        %913 = vmatpush2.bf16.xpose.msra.mxu0 0
        %914 = vmatprep.subr.bf16.mxu0 0
        %915 = vmatpush2.bf16.xpose.msra.mxu0 0
        %916 = vmatprep.mubr.bf16.mxu0 0
        %917 = vmatmul.mubr.bf16.gmra.mxu0 %v879
        %v918 = vpop.f32.mrf.mxu0
        %v919 = vadd.f32 0.0, %v918
        %v920 = vpop.f32.mrf.mxu0
        %v921 = vpop.f32.mrf.mxu0
        %v922 = vpop.f32.mrf.mxu0
        %923 = vdwg.mxu0
        %v924 = vsel %vm540, %v919, -inf
        %925 = vmax.xlane.f32.xlu0 %v924
        %v926 = vpop.xlane.xlu0 %925
        %v927 = vsub.f32 %v919, %v926
        %v928 = vmul.f32 %v927, 1.442695
        %v929 = vpow.pop %v928
        %v930 = vsel %vm540, %v929, 0.0
        %931 = vadd.xlane.f32.xlu0 %v930
        %v932 = vpop.xlane.xlu0 %931
        %v933 = vmul.f32 %v932, 5.656854
        %v934 = vrcp.pop %v933
        %v935 = vmul.f32 %v929, %v934
        %v936 = vpack.c.bf16 %v935, %v935
        %937 = vrot.lane.b32.xlu0 %v536, 40
        %v938 = vpop.permute.xlu0 %937
        %v940 = vsel %vm540, %v936, 0
        %v943 = vsel %vm605, %v938, 0
        %945 = vmatprep.subr.bf16.mxu0 0
        %946 = vmatpush1.bf16.msra.mxu0 0
        %947 = vmatprep.subr.bf16.mxu0 0
        %948 = vmatpush1.bf16.msra.mxu0 0
        %949 = vmatprep.subr.bf16.mxu0 0
        %950 = vmatpush1.bf16.msra.mxu0 0
        %951 = vmatprep.subr.bf16.mxu0 0
        %952 = vmatpush1.bf16.msra.mxu0 0
        %953 = vmatprep.subr.bf16.mxu0 0
        %954 = vmatpush1.bf16.msra.mxu0 0
        %955 = vmatprep.subr.bf16.mxu0 0
        %956 = vmatpush1.bf16.msra.mxu0 0
        %957 = vmatprep.subr.bf16.mxu0 0
        %958 = vmatpush1.bf16.msra.mxu0 0
        %959 = vmatprep.subr.bf16.mxu0 0
        %960 = vmatpush1.bf16.msra.mxu0 %v943
        %961 = vmatprep.subr.bf16.mxu0 0
        %962 = vmatpush2.bf16.msra.mxu0 0
        %963 = vmatprep.subr.bf16.mxu0 0
        %964 = vmatpush2.bf16.msra.mxu0 0
        %965 = vmatprep.subr.bf16.mxu0 0
        %966 = vmatpush2.bf16.msra.mxu0 0
        %967 = vmatprep.subr.bf16.mxu0 0
        %968 = vmatpush2.bf16.msra.mxu0 0
        %969 = vmatprep.subr.bf16.mxu0 0
        %970 = vmatpush2.bf16.msra.mxu0 0
        %971 = vmatprep.subr.bf16.mxu0 0
        %972 = vmatpush2.bf16.msra.mxu0 0
        %973 = vmatprep.subr.bf16.mxu0 0
        %974 = vmatpush2.bf16.msra.mxu0 0
        %975 = vmatprep.subr.bf16.mxu0 0
        %976 = vmatpush2.bf16.msra.mxu0 0
        %977 = vmatprep.mubr.bf16.mxu0 0
        %978 = vmatmul.mubr.bf16.gmra.mxu0 %v940
        %v979 = vpop.f32.mrf.mxu0
        %v980 = vadd.f32 0.0, %v979
        %v981 = vpop.f32.mrf.mxu0
        %v982 = vpop.f32.mrf.mxu0
        %v983 = vpop.f32.mrf.mxu0
        %984 = vdwg.mxu0
        %v985 = vpack.c.bf16 %v980, %v980
        %987 = vrot.lane.b32.xlu0 %v761, 8
        %v988 = vpop.permute.xlu0 %987
        %990 = vrot.lane.b32.xlu0 %v873, 16
        %v991 = vpop.permute.xlu0 %990
        %993 = vrot.lane.b32.xlu0 %v985, 24
        %v994 = vpop.permute.xlu0 %993
        %v997 = vsel %vm540, %v649, %v988
        %vm998 = vcmask 130048
        %v1000 = vsel %vm998, %v997, %v991
        %vm1001 = vcmask 195584
        %v1003 = vsel %vm1001, %v1000, %v994
        %v1004 = vld [vmem:[%s5] sm:$0xf]
        %v1005 = vld [vmem:[%s5 + $0x4] sm:$0xf]
        %v1006 = vld [vmem:[%s5 + $0x8] sm:$0xf]
        %v1007 = vld [vmem:[%s5 + $0xc] sm:$0xf]
        %v1008 = vld [vmem:[%s6] sm:$0x1]
        %v1010 = vlaneseq
        %v1011 = vshrl.u32 %v1010, 7
        %v1012 = vsub.s32 0, %v1011
        %v1013 = vrot.slane %v1008, %v1012
        %v1019 = vunpack.c.l.b16 %v1004
        %v1020 = vunpack.c.l.b16 %v1005
        %v1021 = vunpack.c.l.b16 %v1006
        %v1022 = vunpack.c.l.b16 %v1007
        %v1023 = vpack.c.b16 %v1020, %v1019
        %v1024 = vpack.c.b16 %v1022, %v1021
        %v1027 = vsel %vm440, %v1003, 0
        %1029 = vmatprep.subr.bf16.mxu0 0
        %1030 = vmatpush1.bf16.msra.mxu0 0
        %1031 = vmatprep.subr.bf16.mxu0 0
        %1032 = vmatpush1.bf16.msra.mxu0 0
        %1033 = vmatprep.subr.bf16.mxu0 0
        %1034 = vmatpush1.bf16.msra.mxu0 0
        %1035 = vmatprep.subr.bf16.mxu0 0
        %1036 = vmatpush1.bf16.msra.mxu0 0
        %1037 = vmatprep.subr.bf16.mxu0 0
        %1038 = vmatpush1.bf16.msra.mxu0 0
        %1039 = vmatprep.subr.bf16.mxu0 0
        %1040 = vmatpush1.bf16.msra.mxu0 0
        %1041 = vmatprep.subr.bf16.mxu0 0
        %1042 = vmatpush1.bf16.msra.mxu0 %v1024
        %1043 = vmatprep.subr.bf16.mxu0 0
        %1044 = vmatpush1.bf16.msra.mxu0 %v1023
        %1045 = vmatprep.subr.bf16.mxu0 0
        %1046 = vmatpush2.bf16.msra.mxu0 0
        %1047 = vmatprep.subr.bf16.mxu0 0
        %1048 = vmatpush2.bf16.msra.mxu0 0
        %1049 = vmatprep.subr.bf16.mxu0 0
        %1050 = vmatpush2.bf16.msra.mxu0 0
        %1051 = vmatprep.subr.bf16.mxu0 0
        %1052 = vmatpush2.bf16.msra.mxu0 0
        %1053 = vmatprep.subr.bf16.mxu0 0
        %1054 = vmatpush2.bf16.msra.mxu0 0
        %1055 = vmatprep.subr.bf16.mxu0 0
        %1056 = vmatpush2.bf16.msra.mxu0 0
        %1057 = vmatprep.subr.bf16.mxu0 0
        %1058 = vmatpush2.bf16.msra.mxu0 0
        %1059 = vmatprep.subr.bf16.mxu0 0
        %1060 = vmatpush2.bf16.msra.mxu0 0
        %1061 = vmatprep.mubr.bf16.mxu0 0
        %1062 = vmatmul.mubr.bf16.gmra.mxu0 %v1027
        %v1063 = vpop.f32.mrf.mxu0
        %v1064 = vadd.f32 %v1013, %v1063
        %v1065 = vpop.f32.mrf.mxu0
        %v1066 = vpop.f32.mrf.mxu0
        %v1067 = vpop.f32.mrf.mxu0
        %1068 = vdwg.mxu0
        %v1069 = vadd.f32 %v437, %v1064
        %v1070 = vld [vmem:[%s7] sm:$0x1]
        %v1071 = vld [vmem:[%s8] sm:$0x1]
        %v1072 = vsel %vm440, %v1069, 0.0
        %1073 = vadd.xlane.f32.xlu0 %v1072
        %v1074 = vpop.xlane.xlu0 %1073
        %v1075 = vmul.f32 %v1074, %v444
        %v1076 = vsub.f32 %v1069, %v1075
        %v1077 = vmul.f32 %v1076, %v1076
        %v1078 = vsel %vm440, %v1077, 0.0
        %1079 = vadd.xlane.f32.xlu0 %v1078
        %v1080 = vpop.xlane.xlu0 %1079
        %v1081 = vmul.f32 %v1080, %v444
        %v1082 = vadd.f32 %v1081, 1e-05
        %v1083 = vrsqrt.pop %v1082
        %v1084 = vmul.f32 %v1076, %v1083
        %v1086 = vlaneseq
        %v1087 = vshrl.u32 %v1086, 7
        %v1088 = vsub.s32 0, %v1087
        %v1089 = vrot.slane %v1070, %v1088
        %v1091 = vmul.f32 %v1084, %v1089
        %v1093 = vlaneseq
        %v1094 = vshrl.u32 %v1093, 7
        %v1095 = vsub.s32 0, %v1094
        %v1096 = vrot.slane %v1071, %v1095
        %v1098 = vadd.f32 %v1091, %v1096
        %v1099 = vpack.c.bf16 %v1098, %v1098
        %v1100 = vld [vmem:[%s12] sm:$0x1]
        %v1102 = vlaneseq
        %v1103 = vshrl.u32 %v1102, 7
        %v1104 = vsub.s32 0, %v1103
        %v1105 = vrot.slane %v1100, %v1104
        %v1107 = vadd.f32 %v1069, %v1105
        %v1108 = vld [vmem:[%s9] sm:$0xf]
        %v1109 = vld [vmem:[%s9 + $0x4] sm:$0xf]
        %v1110 = vld [vmem:[%s9 + $0x8] sm:$0xf]
        %v1111 = vld [vmem:[%s9 + $0xc] sm:$0xf]
        %v1112 = vld [vmem:[%s10] sm:$0x1]
        %v1114 = vlaneseq
        %v1115 = vshrl.u32 %v1114, 7
        %v1116 = vsub.s32 0, %v1115
        %v1117 = vrot.slane %v1112, %v1116
        %v1123 = vunpack.c.l.b16 %v1108
        %v1124 = vunpack.c.l.b16 %v1109
        %v1125 = vunpack.c.l.b16 %v1110
        %v1126 = vunpack.c.l.b16 %v1111
        %v1127 = vpack.c.b16 %v1124, %v1123
        %v1128 = vpack.c.b16 %v1126, %v1125
        %v1132 = vsel %vm440, %v1099, 0
        %1134 = vmatprep.subr.bf16.mxu0 0
        %1135 = vmatpush1.bf16.msra.mxu0 0
        %1136 = vmatprep.subr.bf16.mxu0 0
        %1137 = vmatpush1.bf16.msra.mxu0 0
        %1138 = vmatprep.subr.bf16.mxu0 0
        %1139 = vmatpush1.bf16.msra.mxu0 0
        %1140 = vmatprep.subr.bf16.mxu0 0
        %1141 = vmatpush1.bf16.msra.mxu0 0
        %1142 = vmatprep.subr.bf16.mxu0 0
        %1143 = vmatpush1.bf16.msra.mxu0 0
        %1144 = vmatprep.subr.bf16.mxu0 0
        %1145 = vmatpush1.bf16.msra.mxu0 0
        %1146 = vmatprep.subr.bf16.mxu0 0
        %1147 = vmatpush1.bf16.msra.mxu0 %v1128
        %1148 = vmatprep.subr.bf16.mxu0 0
        %1149 = vmatpush1.bf16.msra.mxu0 %v1127
        %1150 = vmatprep.subr.bf16.mxu0 0
        %1151 = vmatpush2.bf16.msra.mxu0 0
        %1152 = vmatprep.subr.bf16.mxu0 0
        %1153 = vmatpush2.bf16.msra.mxu0 0
        %1154 = vmatprep.subr.bf16.mxu0 0
        %1155 = vmatpush2.bf16.msra.mxu0 0
        %1156 = vmatprep.subr.bf16.mxu0 0
        %1157 = vmatpush2.bf16.msra.mxu0 0
        %1158 = vmatprep.subr.bf16.mxu0 0
        %1159 = vmatpush2.bf16.msra.mxu0 0
        %1160 = vmatprep.subr.bf16.mxu0 0
        %1161 = vmatpush2.bf16.msra.mxu0 0
        %1162 = vmatprep.subr.bf16.mxu0 0
        %1163 = vmatpush2.bf16.msra.mxu0 0
        %1164 = vmatprep.subr.bf16.mxu0 0
        %1165 = vmatpush2.bf16.msra.mxu0 0
        %1166 = vmatprep.mubr.bf16.mxu0 0
        %1167 = vmatmul.mubr.bf16.gmra.mxu0 %v1132
        %v1168 = vpop.f32.mrf.mxu0
        %v1169 = vadd.f32 %v1117, %v1168
        %v1170 = vpop.f32.mrf.mxu0
        %v1171 = vpop.f32.mrf.mxu0
        %v1172 = vpop.f32.mrf.mxu0
        %1173 = vdwg.mxu0
        %v1174 = vmul.f32 %v1169, 0.5
        %v1175 = vmul.f32 %v1169, 0.044715
        %v1176 = vmul.f32 %v1175, %v1169
        %v1177 = vmul.f32 %v1176, %v1169
        %v1178 = vadd.f32 %v1169, %v1177
        %v1179 = vmul.f32 %v1178, 0.7978846
        %v1180 = vtanh.pop %v1179
        %v1181 = vadd.f32 %v1180, 1.0
        %v1182 = vmul.f32 %v1174, %v1181
        %v1183 = vpack.c.bf16 %v1182, %v1182
        %v1184 = vld [vmem:[%s11] sm:$0xf]
        %v1185 = vld [vmem:[%s11 + $0x4] sm:$0xf]
        %v1186 = vld [vmem:[%s11 + $0x8] sm:$0xf]
        %v1187 = vld [vmem:[%s11 + $0xc] sm:$0xf]
        %v1188 = vld [vmem:[%s11 + $0x10] sm:$0xf]
        %v1189 = vld [vmem:[%s11 + $0x14] sm:$0xf]
        %v1190 = vld [vmem:[%s11 + $0x18] sm:$0xf]
        %v1191 = vld [vmem:[%s11 + $0x1c] sm:$0xf]
        %v1192 = vld [vmem:[%s11 + $0x20] sm:$0xf]
        %v1193 = vld [vmem:[%s11 + $0x24] sm:$0xf]
        %v1194 = vld [vmem:[%s11 + $0x28] sm:$0xf]
        %v1195 = vld [vmem:[%s11 + $0x2c] sm:$0xf]
        %v1196 = vld [vmem:[%s11 + $0x30] sm:$0xf]
        %v1197 = vld [vmem:[%s11 + $0x34] sm:$0xf]
        %v1198 = vld [vmem:[%s11 + $0x38] sm:$0xf]
        %v1199 = vld [vmem:[%s11 + $0x3c] sm:$0xf]
        %v1216 = vunpack.c.l.b16 %v1184
        %v1217 = vunpack.c.l.b16 %v1185
        %v1218 = vunpack.c.l.b16 %v1186
        %v1219 = vunpack.c.l.b16 %v1187
        %v1220 = vunpack.c.l.b16 %v1188
        %v1221 = vunpack.c.l.b16 %v1189
        %v1222 = vunpack.c.l.b16 %v1190
        %v1223 = vunpack.c.l.b16 %v1191
        %v1224 = vunpack.c.l.b16 %v1192
        %v1225 = vunpack.c.l.b16 %v1193
        %v1226 = vunpack.c.l.b16 %v1194
        %v1227 = vunpack.c.l.b16 %v1195
        %v1228 = vunpack.c.l.b16 %v1196
        %v1229 = vunpack.c.l.b16 %v1197
        %v1230 = vunpack.c.l.b16 %v1198
        %v1231 = vunpack.c.l.b16 %v1199
        %v1232 = vpack.c.b16 %v1217, %v1216
        %v1233 = vpack.c.b16 %v1219, %v1218
        %v1234 = vpack.c.b16 %v1221, %v1220
        %v1235 = vpack.c.b16 %v1223, %v1222
        %v1236 = vpack.c.b16 %v1225, %v1224
        %v1237 = vpack.c.b16 %v1227, %v1226
        %v1238 = vpack.c.b16 %v1229, %v1228
        %v1239 = vpack.c.b16 %v1231, %v1230
        %1248 = vmatprep.subr.bf16.mxu0 0
        %1249 = vmatpush1.bf16.msra.mxu0 %v1239
        %1250 = vmatprep.subr.bf16.mxu0 0
        %1251 = vmatpush1.bf16.msra.mxu0 %v1238
        %1252 = vmatprep.subr.bf16.mxu0 0
        %1253 = vmatpush1.bf16.msra.mxu0 %v1237
        %1254 = vmatprep.subr.bf16.mxu0 0
        %1255 = vmatpush1.bf16.msra.mxu0 %v1236
        %1256 = vmatprep.subr.bf16.mxu0 0
        %1257 = vmatpush1.bf16.msra.mxu0 %v1235
        %1258 = vmatprep.subr.bf16.mxu0 0
        %1259 = vmatpush1.bf16.msra.mxu0 %v1234
        %1260 = vmatprep.subr.bf16.mxu0 0
        %1261 = vmatpush1.bf16.msra.mxu0 %v1233
        %1262 = vmatprep.subr.bf16.mxu0 0
        %1263 = vmatpush1.bf16.msra.mxu0 %v1232
        %1264 = vmatprep.subr.bf16.mxu0 0
        %1265 = vmatpush2.bf16.msra.mxu0 0
        %1266 = vmatprep.subr.bf16.mxu0 0
        %1267 = vmatpush2.bf16.msra.mxu0 0
        %1268 = vmatprep.subr.bf16.mxu0 0
        %1269 = vmatpush2.bf16.msra.mxu0 0
        %1270 = vmatprep.subr.bf16.mxu0 0
        %1271 = vmatpush2.bf16.msra.mxu0 0
        %1272 = vmatprep.subr.bf16.mxu0 0
        %1273 = vmatpush2.bf16.msra.mxu0 0
        %1274 = vmatprep.subr.bf16.mxu0 0
        %1275 = vmatpush2.bf16.msra.mxu0 0
        %1276 = vmatprep.subr.bf16.mxu0 0
        %1277 = vmatpush2.bf16.msra.mxu0 0
        %1278 = vmatprep.subr.bf16.mxu0 0
        %1279 = vmatpush2.bf16.msra.mxu0 0
        %1280 = vmatprep.mubr.bf16.mxu0 0
        %1281 = vmatmul.mubr.bf16.gmra.mxu0 %v1183
        %v1282 = vpop.f32.mrf.mxu0
        %v1283 = vadd.f32 0.0, %v1282
        %v1284 = vpop.f32.mrf.mxu0
        %v1285 = vpop.f32.mrf.mxu0
        %v1286 = vpop.f32.mrf.mxu0
        %1287 = vdwg.mxu0
        %v1288 = vadd.f32 %v1107, %v1283
        %1289 = vst.msk [vmem:[%s431] sm:$0xff] %vm440, %v1288
        %s1290 = sand.u32 %s313, 1
        %s1291 = scalar_lea.sflag [#allocation3], %s1290
        %s1292 = sand.u32 %s313, 1
        %s1293 = smul.addr %s1292, 8
        %s1294 = scalar_lea.vmem [#allocation2], %s1293
        // Predicated region
        $region73: #{tpu_custom_call.1} parent=71 // pred_check
          %p1295 = pneg %p323
        $region74: #{tpu_custom_call.1} parent=71 // pred_check_branch
          %1297 = sbr.rel (%p1295) target = $region76
        $region75: #{tpu_custom_call.1} parent=71 // pred_region
          %s1299 = ssub.s32 128, 128
          %1300 = vsyncadd %s1291, %s1299
          %s1301 = smul.addr %s27, 128
          %s1302 = scalar_lea.hbm %s13, %s1301
          %s1304 = sshll.u32 %s1294, 4
          %s1305 = int_to_ptr.vmem [resolvable:$true] %s1304
          %1307 = dma.vmem_to_hbm [thread:$0]  %s1305, 128, %s1302, %s1291
        $region76: #{tpu_custom_call.1} parent=71 // pred_fallthru
          _
      $region72: #{tpu_custom_call.1} parent=5 // pred_fallthru
        _
      %p1308 = scmp.le.s32.totalorder 2, %s22
      // Predicated region
      $region77: #{tpu_custom_call.1} parent=5 // pred_check
        %p1309 = pneg %p1308
      $region78: #{tpu_custom_call.1} parent=5 // pred_check_branch
        %1311 = sbr.rel (%p1309) target = $region80
      $region79: #{tpu_custom_call.1} parent=5 // pred_region
        %s1312 = ssub.s32 %s22, 2
        // Predicated region
        $region81: #{tpu_custom_call.1} parent=79 // pred_check
          %p1313 = pneg %p329
        $region82: #{tpu_custom_call.1} parent=79 // pred_check_branch
          %1315 = sbr.rel (%p1313) target = $region84
        $region83: #{tpu_custom_call.1} parent=79 // pred_region
          %s1316 = sand.u32 %s314, 1
          %s1317 = scalar_lea.sflag [#allocation3], %s1316
          %s1318 = sand.u32 %s314, 1
          %s1319 = smul.addr %s1318, 8
          %s1320 = scalar_lea.vmem [#allocation2], %s1319
          %1321 = dma.done %s1317, 128
        $region84: #{tpu_custom_call.1} parent=79 // pred_fallthru
          _
      $region80: #{tpu_custom_call.1} parent=5 // pred_fallthru
        _
    $region6: #{tpu_custom_call.1} parent=1 // loop_footer
      %s26 = sadd.s32 1, %s22
    $region7: #{tpu_custom_call.1} parent=1 // loop_footer_branch
      %21 = sbr.rel target = $region3
    $region8: #{tpu_custom_call.1} parent=1 // loop_exit
      _
    %1322 = vsyncpa [#allocation3], 1
    %s1323 = scalar_lea.sflag [#allocation3], 1
    %1324 = vsyncpa %s1323, 1

</llo_original>
